<compile_context>
chip_gen: v7x
topology: tpu7x:2x2x1
jax: 0.10.0
libtpu: 0.0.40
codegen_flags: <defaults>
</compile_context>

<pallas_src>
import functools

import jax
import jax.numpy as jnp
from jax.experimental import pallas as pl
from jax.experimental.pallas import tpu as pltpu


def _s2_act_kernel(tg_ref, fgT_ref, x_ref, o_ref, x2_ref):
    # tg_ref : (BA, I)      to_grid_mat flattened over (b, a)     [resident]
    # fgT_ref: (I, BA)      from_grid_mat flattened + transposed  [resident]
    # x_ref  : (Zt, I, C)   one block of the batch, native layout
    # o_ref  : (Zt, I, C)   matching output block
    # x2_ref : (I, Zt*C)    lane-dense VMEM scratch (mat_dtype)
    Zt, I, C = x_ref.shape

    # ---- gather: (Zt, I, C) -> lane-dense (I, Zt*C) scratch ---------------
    # Static slab copies; with C a multiple of 128 these are unmasked,
    # lane-aligned stores.  This replaces the old wrapper HBM transpose.
    for z in range(Zt):
        x2_ref[:, z * C:(z + 1) * C] = x_ref[z].astype(x2_ref.dtype)

    tg = tg_ref[...]                     # (BA, I)
    fgT = fgT_ref[...]                   # (I, BA)

    # ---- to-grid projection: (BA, I) @ (I, Zt*C), f32 accumulation --------
    xg = jnp.dot(tg, x2_ref[...], preferred_element_type=jnp.float32)

    # ---- SiLU: x*sigmoid(x) == 0.5*x*(1 + tanh(0.5*x)) -> 1 EUP op/element.
    # Kept in f32 for portability (on v6e/v7x the tanh could run in bf16 for
    # extra EUP rate at slightly looser numerics).
    xg = 0.5 * xg * (1.0 + jnp.tanh(0.5 * xg))

    # ---- from-grid projection: (I, BA) @ (BA, Zt*C), f32 accumulation -----
    out2 = jnp.dot(fgT, xg.astype(fgT.dtype), preferred_element_type=jnp.float32)

    # ---- scatter back: (I, Zt*C) -> (Zt, I, C) for a contiguous writeback -
    for z in range(Zt):
        o_ref[z] = out2[:, z * C:(z + 1) * C].astype(o_ref.dtype)


def _pick_zt(Z, C, target_cols):
    """Largest divisor of Z with zt*C <= target_cols; prefer >= 2 grid steps."""
    divisors = [d for d in range(1, Z + 1) if Z % d == 0]
    fitting = [d for d in divisors if d * C <= target_cols] or [1]
    zt = max(fitting)
    if zt == Z and Z > 1:
        smaller = [d for d in divisors if d < Z]
        # Split into >= 2 steps (keeps both v7x TensorCores busy) unless the
        # resulting tiles would be tiny.
        if smaller and max(smaller) * C >= 1024:
            zt = max(smaller)
    return zt


@functools.partial(jax.jit, static_argnames=("zt", "target_cols", "mat_dtype"))
def s2_activation(inputs, to_grid_mat, from_grid_mat, *,
                  zt=None, target_cols=8192, mat_dtype=jnp.bfloat16):
    """
    inputs:        (Z, I, C)
    to_grid_mat:   (B, A, I)
    from_grid_mat: (B, A, I)
    returns:       (Z, I, C)  same dtype as inputs

    mat_dtype controls the MXU operand dtype (bf16 default, recommended on
    v5e/v6e/v7x); accumulation and the SiLU are always f32.  Passing bf16
    `inputs` additionally halves the streamed HBM bytes.
    """
    Z, I, C = inputs.shape
    B, A, I2 = to_grid_mat.shape
    assert I == I2 and from_grid_mat.shape == to_grid_mat.shape
    BA = B * A

    # Grid matrices are tiny: flatten (b, a) once, pre-transpose from_grid_mat
    # so the kernel's second matmul is a plain (I, BA) @ (BA, N).
    tg_flat = to_grid_mat.reshape(BA, I).astype(mat_dtype)       # (BA, I)
    fg_T = from_grid_mat.reshape(BA, I).T.astype(mat_dtype)      # (I, BA)

    if zt is None:
        zt = _pick_zt(Z, C, target_cols)
    assert Z % zt == 0, "zt must divide Z so blocks tile the batch exactly"
    n_steps = Z // zt
    n_cols = zt * C                      # fused lane-dense Zt*C axis

    in_bytes = jnp.dtype(inputs.dtype).itemsize
    out_bytes = in_bytes
    mat_bytes = jnp.dtype(mat_dtype).itemsize

    # Rough per-step VMEM footprint: double-buffered I/O blocks + scratch +
    # the f32 grid intermediate (+ its cast copy) + the small grid matrices.
    vmem_need = (2 * zt * I * C * (in_bytes + out_bytes)
                 + I * n_cols * mat_bytes                   # x2 scratch
                 + BA * n_cols * (4 + mat_bytes)            # xg f32 + bf16 cast
                 + I * n_cols * 4                           # out2 f32
                 + 2 * BA * I * mat_bytes)
    vmem_limit = int(min(56 * 2**20, max(32 * 2**20, 2 * vmem_need)))

    cost = pl.CostEstimate(
        flops=4 * BA * I * Z * C + 4 * BA * Z * C,          # two matmuls + SiLU muls
        transcendentals=BA * Z * C,                         # one tanh per grid point
        bytes_accessed=Z * I * C * (in_bytes + out_bytes) + 2 * BA * I * mat_bytes,
    )

    return pl.pallas_call(
        _s2_act_kernel,
        out_shape=jax.ShapeDtypeStruct((Z, I, C), inputs.dtype),
        grid_spec=pltpu.PrefetchScalarGridSpec(
            num_scalar_prefetch=0,
            grid=(n_steps,),
            in_specs=[
                pl.BlockSpec((BA, I), lambda n: (0, 0)),        # to_grid (resident)
                pl.BlockSpec((I, BA), lambda n: (0, 0)),        # from_grid^T (resident)
                pl.BlockSpec((zt, I, C), lambda n: (n, 0, 0)),  # batch block
            ],
            out_specs=pl.BlockSpec((zt, I, C), lambda n: (n, 0, 0)),
            scratch_shapes=[pltpu.VMEM((I, n_cols), mat_dtype)],
        ),
        compiler_params=pltpu.CompilerParams(
            dimension_semantics=("parallel",),
            vmem_limit_bytes=vmem_limit,
        ),
        cost_estimate=cost,
    )(tg_flat, fg_T, inputs)


def s2_activation_ref(inputs, to_grid_mat, from_grid_mat):
    x_grid = jnp.einsum('bai,zic->zbac', to_grid_mat, inputs)
    x_grid = x_grid * jax.nn.sigmoid(x_grid)
    return jnp.einsum('bai,zbac->zic', from_grid_mat, x_grid)


if __name__ == "__main__":
    # Small, deterministic setup consistent with S2Activation(lmax=3, mmax=3):
    #   I  = (lmax+1)^2 = 16 spherical-harmonic coefficients
    #   BA = 8 x 16 = 128 sphere grid points (theta, phi)
    lmax = 3
    I = (lmax + 1) ** 2          # 16
    B, A = 8, 16                 # sphere grid -> BA = 128
    Z, C = 16, 128               # batch, channels (2 grid steps with zt=8)

    key = jax.random.PRNGKey(0)
    k1, k2, k3 = jax.random.split(key, 3)

    inputs = jax.random.normal(k1, (Z, I, C), dtype=jnp.float32)
    # Deterministic synthetic SO3_grid matrices (normally produced by the
    # SO3_Grid module's Wigner / spherical-harmonic construction).
    to_grid_mat = jax.random.normal(k2, (B, A, I), dtype=jnp.float32) * 0.1
    from_grid_mat = jax.random.normal(k3, (B, A, I), dtype=jnp.float32) * 0.1

    ref = s2_activation_ref(inputs, to_grid_mat, from_grid_mat)

    # f32 MXU-operand path: parity with the PyTorch module.
    out_f32 = s2_activation(inputs, to_grid_mat, from_grid_mat,
                            mat_dtype=jnp.float32)
    out_f32 = jax.block_until_ready(out_f32)
    assert out_f32.shape == (Z, I, C)
    assert jnp.allclose(out_f32, ref, atol=1e-4, rtol=1e-4)

    # Default bf16 MXU-operand path (recommended on v5e/v6e/v7x).
    out = s2_activation(inputs, to_grid_mat, from_grid_mat)
    out = jax.block_until_ready(out)
    assert out.shape == (Z, I, C)
    assert jnp.allclose(out, ref, atol=5e-2, rtol=5e-2)

    print("KERNEL_OK")
</pallas_src>

<mosaic_0001>
module attributes {stable_mosaic.version = 11 : i64} {
  func.func @_s2_act_kernel(%arg0: i32, %arg1: memref<128x16xf32, #tpu.memory_space<vmem>>, %arg2: memref<16x128xf32, #tpu.memory_space<vmem>>, %arg3: memref<8x16x128xf32, #tpu.memory_space<vmem>>, %arg4: memref<8x16x128xf32, #tpu.memory_space<vmem>>, %arg5: memref<16x1024xf32, #tpu.memory_space<vmem>>) attributes {dimension_semantics = [#tpu.dimension_semantics<parallel>], iteration_bounds = array<i64: 2>, scalar_prefetch = 0 : i64, scratch_operands = 1 : i64, tpu.core_type = #tpu.core_type<tc>, window_params = [{pipeline_mode = #tpu.pipeline_mode<synchronous>, transform_indices = @transform_0, window_bounds = array<i64: 128, 16>}, {pipeline_mode = #tpu.pipeline_mode<synchronous>, transform_indices = @transform_1, window_bounds = array<i64: 16, 128>}, {transform_indices = @transform_2, window_bounds = array<i64: 8, 16, 128>}, {transform_indices = @transform_3, window_bounds = array<i64: 8, 16, 128>}]} {
    %c0 = arith.constant 0 : index
    %c0_0 = arith.constant 0 : index
    %c0_1 = arith.constant 0 : index
    %0 = vector.load %arg3[%c0, %c0_0, %c0_1] : memref<8x16x128xf32, #tpu.memory_space<vmem>>, vector<1x16x128xf32>
    %1 = vector.shape_cast %0 : vector<1x16x128xf32> to vector<16x128xf32>
    %c0_2 = arith.constant 0 : index
    %c0_3 = arith.constant 0 : index
    %2 = vector.load %arg5[%c0_2, %c0_3] : memref<16x1024xf32, #tpu.memory_space<vmem>>, vector<16x128xf32>
    tpu.vector_store %arg5[%c0_2, %c0_3], %1 {strides = array<i32>} : memref<16x1024xf32, #tpu.memory_space<vmem>>, vector<16x128xf32>,
    %c1 = arith.constant 1 : index
    %c0_4 = arith.constant 0 : index
    %c0_5 = arith.constant 0 : index
    %3 = vector.load %arg3[%c1, %c0_4, %c0_5] : memref<8x16x128xf32, #tpu.memory_space<vmem>>, vector<1x16x128xf32>
    %4 = vector.shape_cast %3 : vector<1x16x128xf32> to vector<16x128xf32>
    %c0_6 = arith.constant 0 : index
    %c128 = arith.constant 128 : index
    %5 = vector.load %arg5[%c0_6, %c128] : memref<16x1024xf32, #tpu.memory_space<vmem>>, vector<16x128xf32>
    tpu.vector_store %arg5[%c0_6, %c128], %4 {strides = array<i32>} : memref<16x1024xf32, #tpu.memory_space<vmem>>, vector<16x128xf32>,
    %c2 = arith.constant 2 : index
    %c0_7 = arith.constant 0 : index
    %c0_8 = arith.constant 0 : index
    %6 = vector.load %arg3[%c2, %c0_7, %c0_8] : memref<8x16x128xf32, #tpu.memory_space<vmem>>, vector<1x16x128xf32>
    %7 = vector.shape_cast %6 : vector<1x16x128xf32> to vector<16x128xf32>
    %c0_9 = arith.constant 0 : index
    %c256 = arith.constant 256 : index
    %8 = vector.load %arg5[%c0_9, %c256] : memref<16x1024xf32, #tpu.memory_space<vmem>>, vector<16x128xf32>
    tpu.vector_store %arg5[%c0_9, %c256], %7 {strides = array<i32>} : memref<16x1024xf32, #tpu.memory_space<vmem>>, vector<16x128xf32>,
    %c3 = arith.constant 3 : index
    %c0_10 = arith.constant 0 : index
    %c0_11 = arith.constant 0 : index
    %9 = vector.load %arg3[%c3, %c0_10, %c0_11] : memref<8x16x128xf32, #tpu.memory_space<vmem>>, vector<1x16x128xf32>
    %10 = vector.shape_cast %9 : vector<1x16x128xf32> to vector<16x128xf32>
    %c0_12 = arith.constant 0 : index
    %c384 = arith.constant 384 : index
    %11 = vector.load %arg5[%c0_12, %c384] : memref<16x1024xf32, #tpu.memory_space<vmem>>, vector<16x128xf32>
    tpu.vector_store %arg5[%c0_12, %c384], %10 {strides = array<i32>} : memref<16x1024xf32, #tpu.memory_space<vmem>>, vector<16x128xf32>,
    %c4 = arith.constant 4 : index
    %c0_13 = arith.constant 0 : index
    %c0_14 = arith.constant 0 : index
    %12 = vector.load %arg3[%c4, %c0_13, %c0_14] : memref<8x16x128xf32, #tpu.memory_space<vmem>>, vector<1x16x128xf32>
    %13 = vector.shape_cast %12 : vector<1x16x128xf32> to vector<16x128xf32>
    %c0_15 = arith.constant 0 : index
    %c512 = arith.constant 512 : index
    %14 = vector.load %arg5[%c0_15, %c512] : memref<16x1024xf32, #tpu.memory_space<vmem>>, vector<16x128xf32>
    tpu.vector_store %arg5[%c0_15, %c512], %13 {strides = array<i32>} : memref<16x1024xf32, #tpu.memory_space<vmem>>, vector<16x128xf32>,
    %c5 = arith.constant 5 : index
    %c0_16 = arith.constant 0 : index
    %c0_17 = arith.constant 0 : index
    %15 = vector.load %arg3[%c5, %c0_16, %c0_17] : memref<8x16x128xf32, #tpu.memory_space<vmem>>, vector<1x16x128xf32>
    %16 = vector.shape_cast %15 : vector<1x16x128xf32> to vector<16x128xf32>
    %c0_18 = arith.constant 0 : index
    %c640 = arith.constant 640 : index
    %17 = vector.load %arg5[%c0_18, %c640] : memref<16x1024xf32, #tpu.memory_space<vmem>>, vector<16x128xf32>
    tpu.vector_store %arg5[%c0_18, %c640], %16 {strides = array<i32>} : memref<16x1024xf32, #tpu.memory_space<vmem>>, vector<16x128xf32>,
    %c6 = arith.constant 6 : index
    %c0_19 = arith.constant 0 : index
    %c0_20 = arith.constant 0 : index
    %18 = vector.load %arg3[%c6, %c0_19, %c0_20] : memref<8x16x128xf32, #tpu.memory_space<vmem>>, vector<1x16x128xf32>
    %19 = vector.shape_cast %18 : vector<1x16x128xf32> to vector<16x128xf32>
    %c0_21 = arith.constant 0 : index
    %c768 = arith.constant 768 : index
    %20 = vector.load %arg5[%c0_21, %c768] : memref<16x1024xf32, #tpu.memory_space<vmem>>, vector<16x128xf32>
    tpu.vector_store %arg5[%c0_21, %c768], %19 {strides = array<i32>} : memref<16x1024xf32, #tpu.memory_space<vmem>>, vector<16x128xf32>,
    %c7 = arith.constant 7 : index
    %c0_22 = arith.constant 0 : index
    %c0_23 = arith.constant 0 : index
    %21 = vector.load %arg3[%c7, %c0_22, %c0_23] : memref<8x16x128xf32, #tpu.memory_space<vmem>>, vector<1x16x128xf32>
    %22 = vector.shape_cast %21 : vector<1x16x128xf32> to vector<16x128xf32>
    %c0_24 = arith.constant 0 : index
    %c896 = arith.constant 896 : index
    %23 = vector.load %arg5[%c0_24, %c896] : memref<16x1024xf32, #tpu.memory_space<vmem>>, vector<16x128xf32>
    tpu.vector_store %arg5[%c0_24, %c896], %22 {strides = array<i32>} : memref<16x1024xf32, #tpu.memory_space<vmem>>, vector<16x128xf32>,
    %c0_25 = arith.constant 0 : index
    %c0_26 = arith.constant 0 : index
    %24 = vector.load %arg1[%c0_25, %c0_26] : memref<128x16xf32, #tpu.memory_space<vmem>>, vector<128x16xf32>
    %c0_27 = arith.constant 0 : index
    %c0_28 = arith.constant 0 : index
    %25 = vector.load %arg2[%c0_27, %c0_28] : memref<16x128xf32, #tpu.memory_space<vmem>>, vector<16x128xf32>
    %c0_29 = arith.constant 0 : index
    %c0_30 = arith.constant 0 : index
    %26 = vector.load %arg5[%c0_29, %c0_30] : memref<16x1024xf32, #tpu.memory_space<vmem>>, vector<16x1024xf32>
    %cst = arith.constant dense<0.000000e+00> : vector<128x1024xf32>
    %27 = tpu.matmul %24, %26, %cst {dimension_numbers = #tpu.dot_dimension_numbers<[1], [0], [0], [1], [0, 0, 1, 1], [], []>} : vector<128x16xf32>, vector<16x1024xf32>, vector<128x1024xf32> -> vector<128x1024xf32>
    %cst_31 = arith.constant 5.000000e-01 : f32
    %28 = vector.broadcast %cst_31 : f32 to vector<128x1024xf32>
    %29 = arith.mulf %28, %27 : vector<128x1024xf32>
    %cst_32 = arith.constant 5.000000e-01 : f32
    %30 = vector.broadcast %cst_32 : f32 to vector<128x1024xf32>
    %31 = arith.mulf %30, %27 : vector<128x1024xf32>
    %32 = math.tanh %31 : vector<128x1024xf32>
    %cst_33 = arith.constant 1.000000e+00 : f32
    %33 = vector.broadcast %cst_33 : f32 to vector<128x1024xf32>
    %34 = arith.addf %33, %32 : vector<128x1024xf32>
    %35 = arith.mulf %29, %34 : vector<128x1024xf32>
    %cst_34 = arith.constant dense<0.000000e+00> : vector<16x1024xf32>
    %36 = tpu.matmul %25, %35, %cst_34 {dimension_numbers = #tpu.dot_dimension_numbers<[1], [0], [0], [1], [0, 0, 1, 1], [], []>} : vector<16x128xf32>, vector<128x1024xf32>, vector<16x1024xf32> -> vector<16x1024xf32>
    %37 = vector.extract_strided_slice %36 {offsets = [0, 0], sizes = [16, 128], strides = [1, 1]} : vector<16x1024xf32> to vector<16x128xf32>
    %c0_35 = arith.constant 0 : index
    %c0_36 = arith.constant 0 : index
    %c0_37 = arith.constant 0 : index
    %38 = vector.load %arg4[%c0_35, %c0_36, %c0_37] : memref<8x16x128xf32, #tpu.memory_space<vmem>>, vector<1x16x128xf32>
    %39 = vector.shape_cast %38 : vector<1x16x128xf32> to vector<16x128xf32>
    %40 = vector.shape_cast %37 : vector<16x128xf32> to vector<1x16x128xf32>
    tpu.vector_store %arg4[%c0_35, %c0_36, %c0_37], %40 {strides = array<i32>} : memref<8x16x128xf32, #tpu.memory_space<vmem>>, vector<1x16x128xf32>,
    %41 = vector.extract_strided_slice %36 {offsets = [0, 128], sizes = [16, 128], strides = [1, 1]} : vector<16x1024xf32> to vector<16x128xf32>
    %c1_38 = arith.constant 1 : index
    %c0_39 = arith.constant 0 : index
    %c0_40 = arith.constant 0 : index
    %42 = vector.load %arg4[%c1_38, %c0_39, %c0_40] : memref<8x16x128xf32, #tpu.memory_space<vmem>>, vector<1x16x128xf32>
    %43 = vector.shape_cast %42 : vector<1x16x128xf32> to vector<16x128xf32>
    %44 = vector.shape_cast %41 : vector<16x128xf32> to vector<1x16x128xf32>
    tpu.vector_store %arg4[%c1_38, %c0_39, %c0_40], %44 {strides = array<i32>} : memref<8x16x128xf32, #tpu.memory_space<vmem>>, vector<1x16x128xf32>,
    %45 = vector.extract_strided_slice %36 {offsets = [0, 256], sizes = [16, 128], strides = [1, 1]} : vector<16x1024xf32> to vector<16x128xf32>
    %c2_41 = arith.constant 2 : index
    %c0_42 = arith.constant 0 : index
    %c0_43 = arith.constant 0 : index
    %46 = vector.load %arg4[%c2_41, %c0_42, %c0_43] : memref<8x16x128xf32, #tpu.memory_space<vmem>>, vector<1x16x128xf32>
    %47 = vector.shape_cast %46 : vector<1x16x128xf32> to vector<16x128xf32>
    %48 = vector.shape_cast %45 : vector<16x128xf32> to vector<1x16x128xf32>
    tpu.vector_store %arg4[%c2_41, %c0_42, %c0_43], %48 {strides = array<i32>} : memref<8x16x128xf32, #tpu.memory_space<vmem>>, vector<1x16x128xf32>,
    %49 = vector.extract_strided_slice %36 {offsets = [0, 384], sizes = [16, 128], strides = [1, 1]} : vector<16x1024xf32> to vector<16x128xf32>
    %c3_44 = arith.constant 3 : index
    %c0_45 = arith.constant 0 : index
    %c0_46 = arith.constant 0 : index
    %50 = vector.load %arg4[%c3_44, %c0_45, %c0_46] : memref<8x16x128xf32, #tpu.memory_space<vmem>>, vector<1x16x128xf32>
    %51 = vector.shape_cast %50 : vector<1x16x128xf32> to vector<16x128xf32>
    %52 = vector.shape_cast %49 : vector<16x128xf32> to vector<1x16x128xf32>
    tpu.vector_store %arg4[%c3_44, %c0_45, %c0_46], %52 {strides = array<i32>} : memref<8x16x128xf32, #tpu.memory_space<vmem>>, vector<1x16x128xf32>,
    %53 = vector.extract_strided_slice %36 {offsets = [0, 512], sizes = [16, 128], strides = [1, 1]} : vector<16x1024xf32> to vector<16x128xf32>
    %c4_47 = arith.constant 4 : index
    %c0_48 = arith.constant 0 : index
    %c0_49 = arith.constant 0 : index
    %54 = vector.load %arg4[%c4_47, %c0_48, %c0_49] : memref<8x16x128xf32, #tpu.memory_space<vmem>>, vector<1x16x128xf32>
    %55 = vector.shape_cast %54 : vector<1x16x128xf32> to vector<16x128xf32>
    %56 = vector.shape_cast %53 : vector<16x128xf32> to vector<1x16x128xf32>
    tpu.vector_store %arg4[%c4_47, %c0_48, %c0_49], %56 {strides = array<i32>} : memref<8x16x128xf32, #tpu.memory_space<vmem>>, vector<1x16x128xf32>,
    %57 = vector.extract_strided_slice %36 {offsets = [0, 640], sizes = [16, 128], strides = [1, 1]} : vector<16x1024xf32> to vector<16x128xf32>
    %c5_50 = arith.constant 5 : index
    %c0_51 = arith.constant 0 : index
    %c0_52 = arith.constant 0 : index
    %58 = vector.load %arg4[%c5_50, %c0_51, %c0_52] : memref<8x16x128xf32, #tpu.memory_space<vmem>>, vector<1x16x128xf32>
    %59 = vector.shape_cast %58 : vector<1x16x128xf32> to vector<16x128xf32>
    %60 = vector.shape_cast %57 : vector<16x128xf32> to vector<1x16x128xf32>
    tpu.vector_store %arg4[%c5_50, %c0_51, %c0_52], %60 {strides = array<i32>} : memref<8x16x128xf32, #tpu.memory_space<vmem>>, vector<1x16x128xf32>,
    %61 = vector.extract_strided_slice %36 {offsets = [0, 768], sizes = [16, 128], strides = [1, 1]} : vector<16x1024xf32> to vector<16x128xf32>
    %c6_53 = arith.constant 6 : index
    %c0_54 = arith.constant 0 : index
    %c0_55 = arith.constant 0 : index
    %62 = vector.load %arg4[%c6_53, %c0_54, %c0_55] : memref<8x16x128xf32, #tpu.memory_space<vmem>>, vector<1x16x128xf32>
    %63 = vector.shape_cast %62 : vector<1x16x128xf32> to vector<16x128xf32>
    %64 = vector.shape_cast %61 : vector<16x128xf32> to vector<1x16x128xf32>
    tpu.vector_store %arg4[%c6_53, %c0_54, %c0_55], %64 {strides = array<i32>} : memref<8x16x128xf32, #tpu.memory_space<vmem>>, vector<1x16x128xf32>,
    %65 = vector.extract_strided_slice %36 {offsets = [0, 896], sizes = [16, 128], strides = [1, 1]} : vector<16x1024xf32> to vector<16x128xf32>
    %c7_56 = arith.constant 7 : index
    %c0_57 = arith.constant 0 : index
    %c0_58 = arith.constant 0 : index
    %66 = vector.load %arg4[%c7_56, %c0_57, %c0_58] : memref<8x16x128xf32, #tpu.memory_space<vmem>>, vector<1x16x128xf32>
    %67 = vector.shape_cast %66 : vector<1x16x128xf32> to vector<16x128xf32>
    %68 = vector.shape_cast %65 : vector<16x128xf32> to vector<1x16x128xf32>
    tpu.vector_store %arg4[%c7_56, %c0_57, %c0_58], %68 {strides = array<i32>} : memref<8x16x128xf32, #tpu.memory_space<vmem>>, vector<1x16x128xf32>,
    return
  }
  func.func @transform_0(%arg0: i32) -> (i32, i32) {
    %c0_i32 = arith.constant 0 : i32
    %c0_i32_0 = arith.constant 0 : i32
    %c0_i32_1 = arith.constant 0 : i32
    return %c0_i32, %c0_i32_0 : i32, i32
  }
  func.func @transform_1(%arg0: i32) -> (i32, i32) {
    %c0_i32 = arith.constant 0 : i32
    %c0_i32_0 = arith.constant 0 : i32
    %c0_i32_1 = arith.constant 0 : i32
    return %c0_i32, %c0_i32_0 : i32, i32
  }
  func.func @transform_2(%arg0: i32) -> (i32, i32, i32) {
    %c0_i32 = arith.constant 0 : i32
    %c0_i32_0 = arith.constant 0 : i32
    %c0_i32_1 = arith.constant 0 : i32
    return %arg0, %c0_i32, %c0_i32_0 : i32, i32, i32
  }
  func.func @transform_3(%arg0: i32) -> (i32, i32, i32) {
    %c0_i32 = arith.constant 0 : i32
    %c0_i32_0 = arith.constant 0 : i32
    %c0_i32_1 = arith.constant 0 : i32
    return %arg0, %c0_i32, %c0_i32_0 : i32, i32, i32
  }
}

</mosaic_0001>

<llo_original>
// kernel: s2_activation.1
$region0: #{s2_activation.1}
  #allocation0 [shape = 'u32[]', space=smem, size = 0x4, offset = 0x4, fixed_abs, tag = 'smem constant byte address 0x4 - core index']
  #allocation1 [shape = 'u32[144,128]{1,0:T(1,128)}', space=vmem, size = 0x12000, scoped, tag = 'internal scratch']
  #allocation2 [shape = 'f32[16,1024]{1,0:T(8,128)}', space=vmem, size = 0x10000, scoped, tag = 'scratch operand']
  %s0 = inlined_call_operand.vmem [shape: f32[128,16], index: 0, kind: input, shape index: {}]
  %s1 = inlined_call_operand.vmem [shape: f32[16,128], index: 1, kind: input, shape index: {}]
  %s2 = inlined_call_operand.hbm [shape: f32[16,16,128], index: 2, kind: input, shape index: {}]
  %s3 = inlined_call_operand.hbm [shape: f32[16,16,128], index: 3, kind: output, shape index: {}]
  %s4 = sld [smem:[#allocation0]]
  $region49: #{s2_activation.1} parent=0
    _
  %s6 = ssub.s32 1, %s4
  %s7 = scalar_select 0, %s6, %s4
  $region1: #{s2_activation.1} parent=0
    #allocation3 [shape = 'u8[131072]{0}', space=vmem, size = 0x20000, scoped, tag = 'input window, operand 2']
    #allocation4 [shape = 's32[2]{0}', space=sflag, size = 0x8, scoped, tag = 'scoped memory for s2_activation.1']
    #allocation5 [shape = 's32[2]{0}', space=sflag, size = 0x8, scoped, tag = 'scoped memory for s2_activation.1']
    #allocation6 [shape = 'u8[131072]{0}', space=vmem, size = 0x20000, scoped, tag = 'output window, operand 0']
    %8 = vsyncpa [#allocation4], 0
    %s9 = scalar_lea.sflag [#allocation4], 1
    %10 = vsyncpa %s9, 0
    %11 = vsyncpa [#allocation5], 0
    %s12 = scalar_lea.sflag [#allocation5], 1
    %13 = vsyncpa %s12, 0
    loop: start=0, step=1, limit=4
    $region2: #{s2_activation.1} parent=1 // loop_pre_header
      _
    $region3: #{s2_activation.1} parent=1 // loop_header
      %s15 = sphi 0, %s19
      %p16 = scmp.ge.s32.totalorder %s15, 4
      %s23 = sphi 0, %s23
      %s25 = sphi 0, %s23
      %s26 = sphi 0, %s25
      %s40 = sphi 0, %s26
      %s44 = sphi 0, %s44
      %s46 = sphi 0, %s44
      %s47 = sphi 0, %s46
      %s61 = sphi 0, %s47
      %s67 = sphi 0, %s69
      %s70 = sphi 0, %s67
      %s71 = sphi 0, %s70
      %s87 = sphi 0, %s71
      %s93 = sphi 0, %s95
      %s96 = sphi 0, %s93
      %s97 = sphi 0, %s96
      %s113 = sphi 0, %s97
    $region4: #{s2_activation.1} parent=1 // loop_header_branch
      %18 = sbr.rel (%p16) target = $region8
    $region5: #{s2_activation.1} parent=1 // loop_body
      %s20 = ssub.s32 %s15, 1
      %s21 = ssub.s32 %s15, 2
      %s22 = sadd.s32 %s15, 1
      %s24 = sadd.s32 %s23, 1
      %p27 = scmp.eq.s32.totalorder %s15, 1
      %p28 = scmp.ne.s32.totalorder %s23, %s25
      %p29 = scmp.eq.s32.totalorder %s15, 0
      %p30 = por %p28, %p29
      %p31 = scmp.ne.s32.totalorder %s23, %s25
      %p32 = scmp.eq.s32.totalorder %s20, 1
      %p33 = por %p31, %p32
      %p34 = scmp.ne.s32.totalorder %s25, %s26
      %p35 = scmp.eq.s32.totalorder %s20, 0
      %p36 = por %p34, %p35
      %p37 = scmp.ne.s32.totalorder %s25, %s26
      %p38 = scmp.eq.s32.totalorder %s21, 1
      %p39 = por %p37, %p38
      %p41 = scmp.ne.s32.totalorder %s26, %s40
      %p42 = scmp.eq.s32.totalorder %s21, 0
      %p43 = por %p41, %p42
      %s45 = sadd.s32 %s44, 1
      %p48 = scmp.eq.s32.totalorder %s15, 1
      %p49 = scmp.ne.s32.totalorder %s44, %s46
      %p50 = scmp.eq.s32.totalorder %s15, 0
      %p51 = por %p49, %p50
      %p52 = scmp.ne.s32.totalorder %s44, %s46
      %p53 = scmp.eq.s32.totalorder %s20, 1
      %p54 = por %p52, %p53
      %p55 = scmp.ne.s32.totalorder %s46, %s47
      %p56 = scmp.eq.s32.totalorder %s20, 0
      %p57 = por %p55, %p56
      %p58 = scmp.ne.s32.totalorder %s46, %s47
      %p59 = scmp.eq.s32.totalorder %s21, 1
      %p60 = por %p58, %p59
      %p62 = scmp.ne.s32.totalorder %s47, %s61
      %p63 = scmp.eq.s32.totalorder %s21, 0
      %p64 = por %p62, %p63
      %s65 = ssub.s32 %s15, %s22
      %p66 = scmp.eq.s32.totalorder %s65, 0
      %s68 = sadd.s32 %s67, 1
      %s69 = scalar_select %p66, %s67, %s68
      %p72 = pneg %p66
      %p73 = scmp.eq.s32.totalorder %s15, 1
      %p74 = por %p72, %p73
      %p75 = scmp.ne.s32.totalorder %s67, %s70
      %p76 = scmp.eq.s32.totalorder %s15, 0
      %p77 = por %p75, %p76
      %p78 = scmp.ne.s32.totalorder %s67, %s70
      %p79 = scmp.eq.s32.totalorder %s20, 1
      %p80 = por %p78, %p79
      %p81 = scmp.ne.s32.totalorder %s70, %s71
      %p82 = scmp.eq.s32.totalorder %s20, 0
      %p83 = por %p81, %p82
      %p84 = scmp.ne.s32.totalorder %s70, %s71
      %p85 = scmp.eq.s32.totalorder %s21, 1
      %p86 = por %p84, %p85
      %p88 = scmp.ne.s32.totalorder %s71, %s87
      %p89 = scmp.eq.s32.totalorder %s21, 0
      %p90 = por %p88, %p89
      %s91 = ssub.s32 %s15, %s22
      %p92 = scmp.eq.s32.totalorder %s91, 0
      %s94 = sadd.s32 %s93, 1
      %s95 = scalar_select %p92, %s93, %s94
      %p98 = pneg %p92
      %p99 = scmp.eq.s32.totalorder %s15, 1
      %p100 = por %p98, %p99
      %p101 = scmp.ne.s32.totalorder %s93, %s96
      %p102 = scmp.eq.s32.totalorder %s15, 0
      %p103 = por %p101, %p102
      %p104 = scmp.ne.s32.totalorder %s93, %s96
      %p105 = scmp.eq.s32.totalorder %s20, 1
      %p106 = por %p104, %p105
      %p107 = scmp.ne.s32.totalorder %s96, %s97
      %p108 = scmp.eq.s32.totalorder %s20, 0
      %p109 = por %p107, %p108
      %p110 = scmp.ne.s32.totalorder %s96, %s97
      %p111 = scmp.eq.s32.totalorder %s21, 1
      %p112 = por %p110, %p111
      %p114 = scmp.ne.s32.totalorder %s97, %s113
      %p115 = scmp.eq.s32.totalorder %s21, 0
      %p116 = por %p114, %p115
      %p117 = scmp.le.s32.totalorder 1, %s15
      %p118 = scmp.lt.s32.totalorder %s15, 3
      %p119 = pnand %p117, %p118
      %p120 = pneg %p119
      // Predicated region
      $region9: #{s2_activation.1} parent=5 // pred_check
        _
      $region10: #{s2_activation.1} parent=5 // pred_check_branch
        %122 = sbr.rel (%p119) target = $region12
      $region11: #{s2_activation.1} parent=5 // pred_region
        %s123 = ssub.s32 %s15, 1
        // Predicated region
        $region13: #{s2_activation.1} parent=11 // pred_check
          %p124 = pneg %p36
        $region14: #{s2_activation.1} parent=11 // pred_check_branch
          %126 = sbr.rel (%p124) target = $region16
        $region15: #{s2_activation.1} parent=11 // pred_region
          _
        $region16: #{s2_activation.1} parent=11 // pred_fallthru
          _
        // Predicated region
        $region17: #{s2_activation.1} parent=11 // pred_check
          %p127 = pneg %p57
        $region18: #{s2_activation.1} parent=11 // pred_check_branch
          %129 = sbr.rel (%p127) target = $region20
        $region19: #{s2_activation.1} parent=11 // pred_region
          _
        $region20: #{s2_activation.1} parent=11 // pred_fallthru
          _
      $region12: #{s2_activation.1} parent=5 // pred_fallthru
        _
      %p130 = scmp.lt.s32.totalorder %s15, 2
      // Predicated region
      $region21: #{s2_activation.1} parent=5 // pred_check
        %p131 = pneg %p130
      $region22: #{s2_activation.1} parent=5 // pred_check_branch
        %133 = sbr.rel (%p131) target = $region24
      $region23: #{s2_activation.1} parent=5 // pred_region
        // Predicated region
        $region25: #{s2_activation.1} parent=23 // pred_check
          %p134 = pneg %p77
        $region26: #{s2_activation.1} parent=23 // pred_check_branch
          %136 = sbr.rel (%p134) target = $region28
        $region27: #{s2_activation.1} parent=23 // pred_region
          %s137 = sand.u32 %s67, 1
          %s138 = scalar_lea.sflag [#allocation4], %s137
          %s139 = sand.u32 %s67, 1
          %s140 = smul.addr %s139, 128
          %s141 = scalar_lea.vmem [#allocation3], %s140
          %s142 = smul.u32 8, %s15
          %s144 = ssub.s32 2048, 2048
          %145 = vsyncadd %s138, %s144
          %s146 = smul.addr %s142, 2
          %s147 = smul.addr %s146, 128
          %s148 = scalar_lea.hbm %s2, %s147
          %s149 = sshll.u32 %s141, 4
          %s150 = int_to_ptr.vmem [resolvable:$true] %s149
          %155 = dma.hbm_to_vmem [thread:$0]  %s148, 2048, %s150, %s138, 128, 128, 8
        $region28: #{s2_activation.1} parent=23 // pred_fallthru
          _
      $region24: #{s2_activation.1} parent=5 // pred_fallthru
        _
      %p156 = scmp.le.s32.totalorder 1, %s15
      %p157 = scmp.lt.s32.totalorder %s15, 3
      %p158 = pnand %p156, %p157
      %p159 = pneg %p158
      // Predicated region
      $region29: #{s2_activation.1} parent=5 // pred_check
        _
      $region30: #{s2_activation.1} parent=5 // pred_check_branch
        %161 = sbr.rel (%p158) target = $region32
      $region31: #{s2_activation.1} parent=5 // pred_region
        %s162 = ssub.s32 %s15, 1
        %s163 = sand.u32 %s70, 1
        %s164 = scalar_lea.sflag [#allocation4], %s163
        %s165 = sand.u32 %s70, 1
        %s166 = smul.addr %s165, 128
        %s167 = scalar_lea.vmem [#allocation3], %s166
        // Predicated region
        $region33: #{s2_activation.1} parent=31 // pred_check
          %p168 = pneg %p83
        $region34: #{s2_activation.1} parent=31 // pred_check_branch
          %170 = sbr.rel (%p168) target = $region36
        $region35: #{s2_activation.1} parent=31 // pred_region
          %171 = dma.done %s164, 2048
        $region36: #{s2_activation.1} parent=31 // pred_fallthru
          _
        %p172 = pneg %p36
        %p173 = pneg %p33
        %p174 = pneg %p57
        %p175 = pneg %p54
        %s176 = sand.u32 %s70, 1
        %s177 = scalar_lea.sflag [#allocation4], %s176
        %s178 = sand.u32 %s70, 1
        %s179 = smul.addr %s178, 128
        %s180 = scalar_lea.vmem [#allocation3], %s179
        %p181 = pneg %p83
        %p182 = pneg %p80
        %p183 = pneg %p109
        %p184 = pneg %p106
        %s185 = sand.u32 %s96, 1
        %s186 = scalar_lea.sflag [#allocation5], %s185
        %s187 = sand.u32 %s96, 1
        %s188 = smul.addr %s187, 128
        %s189 = scalar_lea.vmem [#allocation6], %s188
        %s190 = smul.u32 8, %s20
        %s191 = smul.u32 8, %s20
        %v192 = vld [vmem:[%s167] sm:$0xff]
        %v193 = vld [vmem:[%s167 + $0x8] sm:$0xff]
        %194 = vst [vmem:[#allocation2] sm:$0xff] %v192
        %195 = vst [vmem:[#allocation2 + $0x40] sm:$0xff] %v193
        %s196 = scalar_lea.vmem %s167, 16 [#allocation3]
        %v197 = vld [vmem:[%s196] sm:$0xff]
        %v198 = vld [vmem:[%s196 + $0x8] sm:$0xff]
        %199 = vst [vmem:[#allocation2 + $0x8] sm:$0xff] %v197
        %200 = vst [vmem:[#allocation2 + $0x48] sm:$0xff] %v198
        %s201 = scalar_lea.vmem %s167, 32 [#allocation3]
        %v202 = vld [vmem:[%s201] sm:$0xff]
        %v203 = vld [vmem:[%s201 + $0x8] sm:$0xff]
        %204 = vst [vmem:[#allocation2 + $0x10] sm:$0xff] %v202
        %205 = vst [vmem:[#allocation2 + $0x50] sm:$0xff] %v203
        %s206 = scalar_lea.vmem %s167, 48 [#allocation3]
        %v207 = vld [vmem:[%s206] sm:$0xff]
        %v208 = vld [vmem:[%s206 + $0x8] sm:$0xff]
        %209 = vst [vmem:[#allocation2 + $0x18] sm:$0xff] %v207
        %210 = vst [vmem:[#allocation2 + $0x58] sm:$0xff] %v208
        %s211 = scalar_lea.vmem %s167, 64 [#allocation3]
        %v212 = vld [vmem:[%s211] sm:$0xff]
        %v213 = vld [vmem:[%s211 + $0x8] sm:$0xff]
        %214 = vst [vmem:[#allocation2 + $0x20] sm:$0xff] %v212
        %215 = vst [vmem:[#allocation2 + $0x60] sm:$0xff] %v213
        %s216 = scalar_lea.vmem %s167, 80 [#allocation3]
        %v217 = vld [vmem:[%s216] sm:$0xff]
        %v218 = vld [vmem:[%s216 + $0x8] sm:$0xff]
        %219 = vst [vmem:[#allocation2 + $0x28] sm:$0xff] %v217
        %220 = vst [vmem:[#allocation2 + $0x68] sm:$0xff] %v218
        %s221 = scalar_lea.vmem %s167, 96 [#allocation3]
        %v222 = vld [vmem:[%s221] sm:$0xff]
        %v223 = vld [vmem:[%s221 + $0x8] sm:$0xff]
        %224 = vst [vmem:[#allocation2 + $0x30] sm:$0xff] %v222
        %225 = vst [vmem:[#allocation2 + $0x70] sm:$0xff] %v223
        %s226 = scalar_lea.vmem %s167, 112 [#allocation3]
        %v227 = vld [vmem:[%s226] sm:$0xff]
        %v228 = vld [vmem:[%s226 + $0x8] sm:$0xff]
        %229 = vst [vmem:[#allocation2 + $0x38] sm:$0xff] %v227
        %230 = vst [vmem:[#allocation2 + $0x78] sm:$0xff] %v228
        %v231 = vld [vmem:[%s0] sm:$0xff]
        %v232 = vld [vmem:[%s0 + $0x8] sm:$0xff]
        %v233 = vld [vmem:[%s0 + $0x10] sm:$0xff]
        %v234 = vld [vmem:[%s0 + $0x18] sm:$0xff]
        %v235 = vld [vmem:[%s0 + $0x20] sm:$0xff]
        %v236 = vld [vmem:[%s0 + $0x28] sm:$0xff]
        %v237 = vld [vmem:[%s0 + $0x30] sm:$0xff]
        %v238 = vld [vmem:[%s0 + $0x38] sm:$0xff]
        %v239 = vld [vmem:[%s0 + $0x40] sm:$0xff]
        %v240 = vld [vmem:[%s0 + $0x48] sm:$0xff]
        %v241 = vld [vmem:[%s0 + $0x50] sm:$0xff]
        %v242 = vld [vmem:[%s0 + $0x58] sm:$0xff]
        %v243 = vld [vmem:[%s0 + $0x60] sm:$0xff]
        %v244 = vld [vmem:[%s0 + $0x68] sm:$0xff]
        %v245 = vld [vmem:[%s0 + $0x70] sm:$0xff]
        %v246 = vld [vmem:[%s0 + $0x78] sm:$0xff]
        %v247 = vld [vmem:[%s1] sm:$0xff]
        %v248 = vld [vmem:[%s1 + $0x8] sm:$0xff]
        %v249 = vld [vmem:[#allocation2] sm:$0xff]
        %v250 = vld [vmem:[#allocation2 + $0x8] sm:$0xff]
        %v251 = vld [vmem:[#allocation2 + $0x10] sm:$0xff]
        %v252 = vld [vmem:[#allocation2 + $0x18] sm:$0xff]
        %v253 = vld [vmem:[#allocation2 + $0x20] sm:$0xff]
        %v254 = vld [vmem:[#allocation2 + $0x28] sm:$0xff]
        %v255 = vld [vmem:[#allocation2 + $0x30] sm:$0xff]
        %v256 = vld [vmem:[#allocation2 + $0x38] sm:$0xff]
        %v257 = vld [vmem:[#allocation2 + $0x40] sm:$0xff]
        %v258 = vld [vmem:[#allocation2 + $0x48] sm:$0xff]
        %v259 = vld [vmem:[#allocation2 + $0x50] sm:$0xff]
        %v260 = vld [vmem:[#allocation2 + $0x58] sm:$0xff]
        %v261 = vld [vmem:[#allocation2 + $0x60] sm:$0xff]
        %v262 = vld [vmem:[#allocation2 + $0x68] sm:$0xff]
        %v263 = vld [vmem:[#allocation2 + $0x70] sm:$0xff]
        %v264 = vld [vmem:[#allocation2 + $0x78] sm:$0xff]
        %vm265 = vcmask 130048
        %v267 = vsel %vm265, %v231, 0
        %v270 = vsel %vm265, %v232, 0
        %v273 = vsel %vm265, %v233, 0
        %v276 = vsel %vm265, %v234, 0
        %v279 = vsel %vm265, %v235, 0
        %v282 = vsel %vm265, %v236, 0
        %v285 = vsel %vm265, %v237, 0
        %v288 = vsel %vm265, %v238, 0
        %v291 = vsel %vm265, %v239, 0
        %v294 = vsel %vm265, %v240, 0
        %v297 = vsel %vm265, %v241, 0
        %v300 = vsel %vm265, %v242, 0
        %v303 = vsel %vm265, %v243, 0
        %v306 = vsel %vm265, %v244, 0
        %v309 = vsel %vm265, %v245, 0
        %v312 = vsel %vm265, %v246, 0
        %314 = vmatprep.subr.mxu0 %v250
        %315 = vmatpush1.msra.mxu0 %v249
        %316 = vmatprep.subr.mxu0 %v258
        %317 = vmatpush1.msra.mxu0 %v257
        %318 = vmatprep.subr.mxu0 0.0
        %319 = vmatpush1.msra.mxu0 0.0
        %320 = vmatprep.subr.mxu0 0.0
        %321 = vmatpush1.msra.mxu0 0.0
        %322 = vmatprep.subr.mxu0 0.0
        %323 = vmatpush1.msra.mxu0 0.0
        %324 = vmatprep.subr.mxu0 0.0
        %325 = vmatpush1.msra.mxu0 0.0
        %326 = vmatprep.subr.mxu0 0.0
        %327 = vmatpush1.msra.mxu0 0.0
        %328 = vmatprep.subr.mxu0 0.0
        %329 = vmatpush1.msra.mxu0 0.0
        %330 = vmatprep.subr.mxu0 0.0
        %331 = vmatpush1.msra.mxu0 0.0
        %332 = vmatprep.subr.mxu0 0.0
        %333 = vmatpush1.msra.mxu0 0.0
        %334 = vmatprep.subr.mxu0 0.0
        %335 = vmatpush1.msra.mxu0 0.0
        %336 = vmatprep.subr.mxu0 0.0
        %337 = vmatpush1.msra.mxu0 0.0
        %338 = vmatprep.subr.mxu0 0.0
        %339 = vmatpush1.msra.mxu0 0.0
        %340 = vmatprep.subr.mxu0 0.0
        %341 = vmatpush1.msra.mxu0 0.0
        %342 = vmatprep.subr.mxu0 0.0
        %343 = vmatpush1.msra.mxu0 0.0
        %344 = vmatprep.subr.mxu0 0.0
        %345 = vmatpush1.msra.mxu0 0.0
        %346 = vmatprep.subr.mxu0 0.0
        %347 = vmatpush1.msra.mxu0 0.0
        %348 = vmatprep.subr.mxu0 0.0
        %349 = vmatpush1.msra.mxu0 0.0
        %350 = vmatprep.subr.mxu0 0.0
        %351 = vmatpush1.msra.mxu0 0.0
        %352 = vmatprep.subr.mxu0 0.0
        %353 = vmatpush1.msra.mxu0 0.0
        %354 = vmatprep.subr.mxu0 0.0
        %355 = vmatpush1.msra.mxu0 0.0
        %356 = vmatprep.subr.mxu0 0.0
        %357 = vmatpush1.msra.mxu0 0.0
        %358 = vmatprep.subr.mxu0 0.0
        %359 = vmatpush1.msra.mxu0 0.0
        %360 = vmatprep.subr.mxu0 0.0
        %361 = vmatpush1.msra.mxu0 0.0
        %362 = vmatprep.subr.mxu0 0.0
        %363 = vmatpush1.msra.mxu0 0.0
        %364 = vmatprep.subr.mxu0 0.0
        %365 = vmatpush1.msra.mxu0 0.0
        %366 = vmatprep.subr.mxu0 0.0
        %367 = vmatpush1.msra.mxu0 0.0
        %368 = vmatprep.subr.mxu0 0.0
        %369 = vmatpush1.msra.mxu0 0.0
        %370 = vmatprep.subr.mxu0 0.0
        %371 = vmatpush1.msra.mxu0 0.0
        %372 = vmatprep.subr.mxu0 0.0
        %373 = vmatpush1.msra.mxu0 0.0
        %374 = vmatprep.subr.mxu0 0.0
        %375 = vmatpush1.msra.mxu0 0.0
        %376 = vmatprep.subr.mxu0 0.0
        %377 = vmatpush1.msra.mxu0 0.0
        %378 = vmatprep.mubr.f32.mxu0 0.0
        %379 = vmatmul.mubr.f32.gmra.mrb[0].mxu0 %v267
        %v380 = vpop.f32.mrb[0].mxu0
        %v381 = vadd.f32 0.0, %v380
        %v382 = vpop.f32.mrb[0].mxu0
        %v383 = vadd.f32 0.0, %v382
        %384 = vmatprep.mubr.f32.mxu0 0.0
        %385 = vmatmul.mubr.f32.gmra.mrb[0].mxu0 %v270
        %v386 = vpop.f32.mrb[0].mxu0
        %v387 = vadd.f32 0.0, %v386
        %v388 = vpop.f32.mrb[0].mxu0
        %v389 = vadd.f32 0.0, %v388
        %390 = vmatprep.mubr.f32.mxu0 0.0
        %391 = vmatmul.mubr.f32.gmra.mrb[0].mxu0 %v273
        %v392 = vpop.f32.mrb[0].mxu0
        %v393 = vadd.f32 0.0, %v392
        %v394 = vpop.f32.mrb[0].mxu0
        %v395 = vadd.f32 0.0, %v394
        %396 = vmatprep.mubr.f32.mxu0 0.0
        %397 = vmatmul.mubr.f32.gmra.mrb[0].mxu0 %v276
        %v398 = vpop.f32.mrb[0].mxu0
        %v399 = vadd.f32 0.0, %v398
        %v400 = vpop.f32.mrb[0].mxu0
        %v401 = vadd.f32 0.0, %v400
        %402 = vmatprep.mubr.f32.mxu0 0.0
        %403 = vmatmul.mubr.f32.gmra.mrb[0].mxu0 %v279
        %v404 = vpop.f32.mrb[0].mxu0
        %v405 = vadd.f32 0.0, %v404
        %v406 = vpop.f32.mrb[0].mxu0
        %v407 = vadd.f32 0.0, %v406
        %408 = vmatprep.mubr.f32.mxu0 0.0
        %409 = vmatmul.mubr.f32.gmra.mrb[0].mxu0 %v282
        %v410 = vpop.f32.mrb[0].mxu0
        %v411 = vadd.f32 0.0, %v410
        %v412 = vpop.f32.mrb[0].mxu0
        %v413 = vadd.f32 0.0, %v412
        %414 = vmatprep.mubr.f32.mxu0 0.0
        %415 = vmatmul.mubr.f32.gmra.mrb[0].mxu0 %v285
        %v416 = vpop.f32.mrb[0].mxu0
        %v417 = vadd.f32 0.0, %v416
        %v418 = vpop.f32.mrb[0].mxu0
        %v419 = vadd.f32 0.0, %v418
        %420 = vmatprep.mubr.f32.mxu0 0.0
        %421 = vmatmul.mubr.f32.gmra.mrb[0].mxu0 %v288
        %v422 = vpop.f32.mrb[0].mxu0
        %v423 = vadd.f32 0.0, %v422
        %v424 = vpop.f32.mrb[0].mxu0
        %v425 = vadd.f32 0.0, %v424
        %426 = vmatprep.mubr.f32.mxu0 0.0
        %427 = vmatmul.mubr.f32.gmra.mrb[0].mxu0 %v291
        %v428 = vpop.f32.mrb[0].mxu0
        %v429 = vadd.f32 0.0, %v428
        %v430 = vpop.f32.mrb[0].mxu0
        %v431 = vadd.f32 0.0, %v430
        %432 = vmatprep.mubr.f32.mxu0 0.0
        %433 = vmatmul.mubr.f32.gmra.mrb[0].mxu0 %v294
        %v434 = vpop.f32.mrb[0].mxu0
        %v435 = vadd.f32 0.0, %v434
        %v436 = vpop.f32.mrb[0].mxu0
        %v437 = vadd.f32 0.0, %v436
        %438 = vmatprep.mubr.f32.mxu0 0.0
        %439 = vmatmul.mubr.f32.gmra.mrb[0].mxu0 %v297
        %v440 = vpop.f32.mrb[0].mxu0
        %v441 = vadd.f32 0.0, %v440
        %v442 = vpop.f32.mrb[0].mxu0
        %v443 = vadd.f32 0.0, %v442
        %444 = vmatprep.mubr.f32.mxu0 0.0
        %445 = vmatmul.mubr.f32.gmra.mrb[0].mxu0 %v300
        %v446 = vpop.f32.mrb[0].mxu0
        %v447 = vadd.f32 0.0, %v446
        %v448 = vpop.f32.mrb[0].mxu0
        %v449 = vadd.f32 0.0, %v448
        %450 = vmatprep.mubr.f32.mxu0 0.0
        %451 = vmatmul.mubr.f32.gmra.mrb[0].mxu0 %v303
        %v452 = vpop.f32.mrb[0].mxu0
        %v453 = vadd.f32 0.0, %v452
        %v454 = vpop.f32.mrb[0].mxu0
        %v455 = vadd.f32 0.0, %v454
        %456 = vmatprep.mubr.f32.mxu0 0.0
        %457 = vmatmul.mubr.f32.gmra.mrb[0].mxu0 %v306
        %v458 = vpop.f32.mrb[0].mxu0
        %v459 = vadd.f32 0.0, %v458
        %v460 = vpop.f32.mrb[0].mxu0
        %v461 = vadd.f32 0.0, %v460
        %462 = vmatprep.mubr.f32.mxu0 0.0
        %463 = vmatmul.mubr.f32.gmra.mrb[0].mxu0 %v309
        %v464 = vpop.f32.mrb[0].mxu0
        %v465 = vadd.f32 0.0, %v464
        %v466 = vpop.f32.mrb[0].mxu0
        %v467 = vadd.f32 0.0, %v466
        %468 = vmatprep.mubr.f32.mxu0 0.0
        %469 = vmatmul.mubr.f32.gmra.mrb[0].mxu0 %v312
        %v470 = vpop.f32.mrb[0].mxu0
        %v471 = vadd.f32 0.0, %v470
        %v472 = vpop.f32.mrb[0].mxu0
        %v473 = vadd.f32 0.0, %v472
        %474 = vdwg.mxu0
        %475 = vmatprep.subr.mxu0 %v252
        %476 = vmatpush1.msra.mxu0 %v251
        %477 = vmatprep.subr.mxu0 %v260
        %478 = vmatpush1.msra.mxu0 %v259
        %479 = vmatprep.subr.mxu0 0.0
        %480 = vmatpush1.msra.mxu0 0.0
        %481 = vmatprep.subr.mxu0 0.0
        %482 = vmatpush1.msra.mxu0 0.0
        %483 = vmatprep.subr.mxu0 0.0
        %484 = vmatpush1.msra.mxu0 0.0
        %485 = vmatprep.subr.mxu0 0.0
        %486 = vmatpush1.msra.mxu0 0.0
        %487 = vmatprep.subr.mxu0 0.0
        %488 = vmatpush1.msra.mxu0 0.0
        %489 = vmatprep.subr.mxu0 0.0
        %490 = vmatpush1.msra.mxu0 0.0
        %491 = vmatprep.subr.mxu0 0.0
        %492 = vmatpush1.msra.mxu0 0.0
        %493 = vmatprep.subr.mxu0 0.0
        %494 = vmatpush1.msra.mxu0 0.0
        %495 = vmatprep.subr.mxu0 0.0
        %496 = vmatpush1.msra.mxu0 0.0
        %497 = vmatprep.subr.mxu0 0.0
        %498 = vmatpush1.msra.mxu0 0.0
        %499 = vmatprep.subr.mxu0 0.0
        %500 = vmatpush1.msra.mxu0 0.0
        %501 = vmatprep.subr.mxu0 0.0
        %502 = vmatpush1.msra.mxu0 0.0
        %503 = vmatprep.subr.mxu0 0.0
        %504 = vmatpush1.msra.mxu0 0.0
        %505 = vmatprep.subr.mxu0 0.0
        %506 = vmatpush1.msra.mxu0 0.0
        %507 = vmatprep.subr.mxu0 0.0
        %508 = vmatpush1.msra.mxu0 0.0
        %509 = vmatprep.subr.mxu0 0.0
        %510 = vmatpush1.msra.mxu0 0.0
        %511 = vmatprep.subr.mxu0 0.0
        %512 = vmatpush1.msra.mxu0 0.0
        %513 = vmatprep.subr.mxu0 0.0
        %514 = vmatpush1.msra.mxu0 0.0
        %515 = vmatprep.subr.mxu0 0.0
        %516 = vmatpush1.msra.mxu0 0.0
        %517 = vmatprep.subr.mxu0 0.0
        %518 = vmatpush1.msra.mxu0 0.0
        %519 = vmatprep.subr.mxu0 0.0
        %520 = vmatpush1.msra.mxu0 0.0
        %521 = vmatprep.subr.mxu0 0.0
        %522 = vmatpush1.msra.mxu0 0.0
        %523 = vmatprep.subr.mxu0 0.0
        %524 = vmatpush1.msra.mxu0 0.0
        %525 = vmatprep.subr.mxu0 0.0
        %526 = vmatpush1.msra.mxu0 0.0
        %527 = vmatprep.subr.mxu0 0.0
        %528 = vmatpush1.msra.mxu0 0.0
        %529 = vmatprep.subr.mxu0 0.0
        %530 = vmatpush1.msra.mxu0 0.0
        %531 = vmatprep.subr.mxu0 0.0
        %532 = vmatpush1.msra.mxu0 0.0
        %533 = vmatprep.subr.mxu0 0.0
        %534 = vmatpush1.msra.mxu0 0.0
        %535 = vmatprep.subr.mxu0 0.0
        %536 = vmatpush1.msra.mxu0 0.0
        %537 = vmatprep.subr.mxu0 0.0
        %538 = vmatpush1.msra.mxu0 0.0
        %539 = vmatprep.mubr.f32.mxu0 0.0
        %540 = vmatmul.mubr.f32.gmra.mrb[0].mxu0 %v267
        %v541 = vpop.f32.mrb[0].mxu0
        %v542 = vadd.f32 0.0, %v541
        %v543 = vpop.f32.mrb[0].mxu0
        %v544 = vadd.f32 0.0, %v543
        %545 = vmatprep.mubr.f32.mxu0 0.0
        %546 = vmatmul.mubr.f32.gmra.mrb[0].mxu0 %v270
        %v547 = vpop.f32.mrb[0].mxu0
        %v548 = vadd.f32 0.0, %v547
        %v549 = vpop.f32.mrb[0].mxu0
        %v550 = vadd.f32 0.0, %v549
        %551 = vmatprep.mubr.f32.mxu0 0.0
        %552 = vmatmul.mubr.f32.gmra.mrb[0].mxu0 %v273
        %v553 = vpop.f32.mrb[0].mxu0
        %v554 = vadd.f32 0.0, %v553
        %v555 = vpop.f32.mrb[0].mxu0
        %v556 = vadd.f32 0.0, %v555
        %557 = vmatprep.mubr.f32.mxu0 0.0
        %558 = vmatmul.mubr.f32.gmra.mrb[0].mxu0 %v276
        %v559 = vpop.f32.mrb[0].mxu0
        %v560 = vadd.f32 0.0, %v559
        %v561 = vpop.f32.mrb[0].mxu0
        %v562 = vadd.f32 0.0, %v561
        %563 = vmatprep.mubr.f32.mxu0 0.0
        %564 = vmatmul.mubr.f32.gmra.mrb[0].mxu0 %v279
        %v565 = vpop.f32.mrb[0].mxu0
        %v566 = vadd.f32 0.0, %v565
        %v567 = vpop.f32.mrb[0].mxu0
        %v568 = vadd.f32 0.0, %v567
        %569 = vmatprep.mubr.f32.mxu0 0.0
        %570 = vmatmul.mubr.f32.gmra.mrb[0].mxu0 %v282
        %v571 = vpop.f32.mrb[0].mxu0
        %v572 = vadd.f32 0.0, %v571
        %v573 = vpop.f32.mrb[0].mxu0
        %v574 = vadd.f32 0.0, %v573
        %575 = vmatprep.mubr.f32.mxu0 0.0
        %576 = vmatmul.mubr.f32.gmra.mrb[0].mxu0 %v285
        %v577 = vpop.f32.mrb[0].mxu0
        %v578 = vadd.f32 0.0, %v577
        %v579 = vpop.f32.mrb[0].mxu0
        %v580 = vadd.f32 0.0, %v579
        %581 = vmatprep.mubr.f32.mxu0 0.0
        %582 = vmatmul.mubr.f32.gmra.mrb[0].mxu0 %v288
        %v583 = vpop.f32.mrb[0].mxu0
        %v584 = vadd.f32 0.0, %v583
        %v585 = vpop.f32.mrb[0].mxu0
        %v586 = vadd.f32 0.0, %v585
        %587 = vmatprep.mubr.f32.mxu0 0.0
        %588 = vmatmul.mubr.f32.gmra.mrb[0].mxu0 %v291
        %v589 = vpop.f32.mrb[0].mxu0
        %v590 = vadd.f32 0.0, %v589
        %v591 = vpop.f32.mrb[0].mxu0
        %v592 = vadd.f32 0.0, %v591
        %593 = vmatprep.mubr.f32.mxu0 0.0
        %594 = vmatmul.mubr.f32.gmra.mrb[0].mxu0 %v294
        %v595 = vpop.f32.mrb[0].mxu0
        %v596 = vadd.f32 0.0, %v595
        %v597 = vpop.f32.mrb[0].mxu0
        %v598 = vadd.f32 0.0, %v597
        %599 = vmatprep.mubr.f32.mxu0 0.0
        %600 = vmatmul.mubr.f32.gmra.mrb[0].mxu0 %v297
        %v601 = vpop.f32.mrb[0].mxu0
        %v602 = vadd.f32 0.0, %v601
        %v603 = vpop.f32.mrb[0].mxu0
        %v604 = vadd.f32 0.0, %v603
        %605 = vmatprep.mubr.f32.mxu0 0.0
        %606 = vmatmul.mubr.f32.gmra.mrb[0].mxu0 %v300
        %v607 = vpop.f32.mrb[0].mxu0
        %v608 = vadd.f32 0.0, %v607
        %v609 = vpop.f32.mrb[0].mxu0
        %v610 = vadd.f32 0.0, %v609
        %611 = vmatprep.mubr.f32.mxu0 0.0
        %612 = vmatmul.mubr.f32.gmra.mrb[0].mxu0 %v303
        %v613 = vpop.f32.mrb[0].mxu0
        %v614 = vadd.f32 0.0, %v613
        %v615 = vpop.f32.mrb[0].mxu0
        %v616 = vadd.f32 0.0, %v615
        %617 = vmatprep.mubr.f32.mxu0 0.0
        %618 = vmatmul.mubr.f32.gmra.mrb[0].mxu0 %v306
        %v619 = vpop.f32.mrb[0].mxu0
        %v620 = vadd.f32 0.0, %v619
        %v621 = vpop.f32.mrb[0].mxu0
        %v622 = vadd.f32 0.0, %v621
        %623 = vmatprep.mubr.f32.mxu0 0.0
        %624 = vmatmul.mubr.f32.gmra.mrb[0].mxu0 %v309
        %v625 = vpop.f32.mrb[0].mxu0
        %v626 = vadd.f32 0.0, %v625
        %v627 = vpop.f32.mrb[0].mxu0
        %v628 = vadd.f32 0.0, %v627
        %629 = vmatprep.mubr.f32.mxu0 0.0
        %630 = vmatmul.mubr.f32.gmra.mrb[0].mxu0 %v312
        %v631 = vpop.f32.mrb[0].mxu0
        %v632 = vadd.f32 0.0, %v631
        %v633 = vpop.f32.mrb[0].mxu0
        %v634 = vadd.f32 0.0, %v633
        %635 = vdwg.mxu0
        %636 = vmatprep.subr.mxu0 %v254
        %637 = vmatpush1.msra.mxu0 %v253
        %638 = vmatprep.subr.mxu0 %v262
        %639 = vmatpush1.msra.mxu0 %v261
        %640 = vmatprep.subr.mxu0 0.0
        %641 = vmatpush1.msra.mxu0 0.0
        %642 = vmatprep.subr.mxu0 0.0
        %643 = vmatpush1.msra.mxu0 0.0
        %644 = vmatprep.subr.mxu0 0.0
        %645 = vmatpush1.msra.mxu0 0.0
        %646 = vmatprep.subr.mxu0 0.0
        %647 = vmatpush1.msra.mxu0 0.0
        %648 = vmatprep.subr.mxu0 0.0
        %649 = vmatpush1.msra.mxu0 0.0
        %650 = vmatprep.subr.mxu0 0.0
        %651 = vmatpush1.msra.mxu0 0.0
        %652 = vmatprep.subr.mxu0 0.0
        %653 = vmatpush1.msra.mxu0 0.0
        %654 = vmatprep.subr.mxu0 0.0
        %655 = vmatpush1.msra.mxu0 0.0
        %656 = vmatprep.subr.mxu0 0.0
        %657 = vmatpush1.msra.mxu0 0.0
        %658 = vmatprep.subr.mxu0 0.0
        %659 = vmatpush1.msra.mxu0 0.0
        %660 = vmatprep.subr.mxu0 0.0
        %661 = vmatpush1.msra.mxu0 0.0
        %662 = vmatprep.subr.mxu0 0.0
        %663 = vmatpush1.msra.mxu0 0.0
        %664 = vmatprep.subr.mxu0 0.0
        %665 = vmatpush1.msra.mxu0 0.0
        %666 = vmatprep.subr.mxu0 0.0
        %667 = vmatpush1.msra.mxu0 0.0
        %668 = vmatprep.subr.mxu0 0.0
        %669 = vmatpush1.msra.mxu0 0.0
        %670 = vmatprep.subr.mxu0 0.0
        %671 = vmatpush1.msra.mxu0 0.0
        %672 = vmatprep.subr.mxu0 0.0
        %673 = vmatpush1.msra.mxu0 0.0
        %674 = vmatprep.subr.mxu0 0.0
        %675 = vmatpush1.msra.mxu0 0.0
        %676 = vmatprep.subr.mxu0 0.0
        %677 = vmatpush1.msra.mxu0 0.0
        %678 = vmatprep.subr.mxu0 0.0
        %679 = vmatpush1.msra.mxu0 0.0
        %680 = vmatprep.subr.mxu0 0.0
        %681 = vmatpush1.msra.mxu0 0.0
        %682 = vmatprep.subr.mxu0 0.0
        %683 = vmatpush1.msra.mxu0 0.0
        %684 = vmatprep.subr.mxu0 0.0
        %685 = vmatpush1.msra.mxu0 0.0
        %686 = vmatprep.subr.mxu0 0.0
        %687 = vmatpush1.msra.mxu0 0.0
        %688 = vmatprep.subr.mxu0 0.0
        %689 = vmatpush1.msra.mxu0 0.0
        %690 = vmatprep.subr.mxu0 0.0
        %691 = vmatpush1.msra.mxu0 0.0
        %692 = vmatprep.subr.mxu0 0.0
        %693 = vmatpush1.msra.mxu0 0.0
        %694 = vmatprep.subr.mxu0 0.0
        %695 = vmatpush1.msra.mxu0 0.0
        %696 = vmatprep.subr.mxu0 0.0
        %697 = vmatpush1.msra.mxu0 0.0
        %698 = vmatprep.subr.mxu0 0.0
        %699 = vmatpush1.msra.mxu0 0.0
        %700 = vmatprep.mubr.f32.mxu0 0.0
        %701 = vmatmul.mubr.f32.gmra.mrb[0].mxu0 %v267
        %v702 = vpop.f32.mrb[0].mxu0
        %v703 = vadd.f32 0.0, %v702
        %v704 = vpop.f32.mrb[0].mxu0
        %v705 = vadd.f32 0.0, %v704
        %706 = vmatprep.mubr.f32.mxu0 0.0
        %707 = vmatmul.mubr.f32.gmra.mrb[0].mxu0 %v270
        %v708 = vpop.f32.mrb[0].mxu0
        %v709 = vadd.f32 0.0, %v708
        %v710 = vpop.f32.mrb[0].mxu0
        %v711 = vadd.f32 0.0, %v710
        %712 = vmatprep.mubr.f32.mxu0 0.0
        %713 = vmatmul.mubr.f32.gmra.mrb[0].mxu0 %v273
        %v714 = vpop.f32.mrb[0].mxu0
        %v715 = vadd.f32 0.0, %v714
        %v716 = vpop.f32.mrb[0].mxu0
        %v717 = vadd.f32 0.0, %v716
        %718 = vmatprep.mubr.f32.mxu0 0.0
        %719 = vmatmul.mubr.f32.gmra.mrb[0].mxu0 %v276
        %v720 = vpop.f32.mrb[0].mxu0
        %v721 = vadd.f32 0.0, %v720
        %v722 = vpop.f32.mrb[0].mxu0
        %v723 = vadd.f32 0.0, %v722
        %724 = vmatprep.mubr.f32.mxu0 0.0
        %725 = vmatmul.mubr.f32.gmra.mrb[0].mxu0 %v279
        %v726 = vpop.f32.mrb[0].mxu0
        %v727 = vadd.f32 0.0, %v726
        %v728 = vpop.f32.mrb[0].mxu0
        %v729 = vadd.f32 0.0, %v728
        %730 = vmatprep.mubr.f32.mxu0 0.0
        %731 = vmatmul.mubr.f32.gmra.mrb[0].mxu0 %v282
        %v732 = vpop.f32.mrb[0].mxu0
        %v733 = vadd.f32 0.0, %v732
        %v734 = vpop.f32.mrb[0].mxu0
        %v735 = vadd.f32 0.0, %v734
        %736 = vmatprep.mubr.f32.mxu0 0.0
        %737 = vmatmul.mubr.f32.gmra.mrb[0].mxu0 %v285
        %v738 = vpop.f32.mrb[0].mxu0
        %v739 = vadd.f32 0.0, %v738
        %v740 = vpop.f32.mrb[0].mxu0
        %v741 = vadd.f32 0.0, %v740
        %742 = vmatprep.mubr.f32.mxu0 0.0
        %743 = vmatmul.mubr.f32.gmra.mrb[0].mxu0 %v288
        %v744 = vpop.f32.mrb[0].mxu0
        %v745 = vadd.f32 0.0, %v744
        %v746 = vpop.f32.mrb[0].mxu0
        %v747 = vadd.f32 0.0, %v746
        %748 = vmatprep.mubr.f32.mxu0 0.0
        %749 = vmatmul.mubr.f32.gmra.mrb[0].mxu0 %v291
        %v750 = vpop.f32.mrb[0].mxu0
        %v751 = vadd.f32 0.0, %v750
        %v752 = vpop.f32.mrb[0].mxu0
        %v753 = vadd.f32 0.0, %v752
        %754 = vmatprep.mubr.f32.mxu0 0.0
        %755 = vmatmul.mubr.f32.gmra.mrb[0].mxu0 %v294
        %v756 = vpop.f32.mrb[0].mxu0
        %v757 = vadd.f32 0.0, %v756
        %v758 = vpop.f32.mrb[0].mxu0
        %v759 = vadd.f32 0.0, %v758
        %760 = vmatprep.mubr.f32.mxu0 0.0
        %761 = vmatmul.mubr.f32.gmra.mrb[0].mxu0 %v297
        %v762 = vpop.f32.mrb[0].mxu0
        %v763 = vadd.f32 0.0, %v762
        %v764 = vpop.f32.mrb[0].mxu0
        %v765 = vadd.f32 0.0, %v764
        %766 = vmatprep.mubr.f32.mxu0 0.0
        %767 = vmatmul.mubr.f32.gmra.mrb[0].mxu0 %v300
        %v768 = vpop.f32.mrb[0].mxu0
        %v769 = vadd.f32 0.0, %v768
        %v770 = vpop.f32.mrb[0].mxu0
        %v771 = vadd.f32 0.0, %v770
        %772 = vmatprep.mubr.f32.mxu0 0.0
        %773 = vmatmul.mubr.f32.gmra.mrb[0].mxu0 %v303
        %v774 = vpop.f32.mrb[0].mxu0
        %v775 = vadd.f32 0.0, %v774
        %v776 = vpop.f32.mrb[0].mxu0
        %v777 = vadd.f32 0.0, %v776
        %778 = vmatprep.mubr.f32.mxu0 0.0
        %779 = vmatmul.mubr.f32.gmra.mrb[0].mxu0 %v306
        %v780 = vpop.f32.mrb[0].mxu0
        %v781 = vadd.f32 0.0, %v780
        %v782 = vpop.f32.mrb[0].mxu0
        %v783 = vadd.f32 0.0, %v782
        %784 = vmatprep.mubr.f32.mxu0 0.0
        %785 = vmatmul.mubr.f32.gmra.mrb[0].mxu0 %v309
        %v786 = vpop.f32.mrb[0].mxu0
        %v787 = vadd.f32 0.0, %v786
        %v788 = vpop.f32.mrb[0].mxu0
        %v789 = vadd.f32 0.0, %v788
        %790 = vmatprep.mubr.f32.mxu0 0.0
        %791 = vmatmul.mubr.f32.gmra.mrb[0].mxu0 %v312
        %v792 = vpop.f32.mrb[0].mxu0
        %v793 = vadd.f32 0.0, %v792
        %v794 = vpop.f32.mrb[0].mxu0
        %v795 = vadd.f32 0.0, %v794
        %796 = vdwg.mxu0
        %797 = vmatprep.subr.mxu0 %v256
        %798 = vmatpush1.msra.mxu0 %v255
        %799 = vmatprep.subr.mxu0 %v264
        %800 = vmatpush1.msra.mxu0 %v263
        %801 = vmatprep.subr.mxu0 0.0
        %802 = vmatpush1.msra.mxu0 0.0
        %803 = vmatprep.subr.mxu0 0.0
        %804 = vmatpush1.msra.mxu0 0.0
        %805 = vmatprep.subr.mxu0 0.0
        %806 = vmatpush1.msra.mxu0 0.0
        %807 = vmatprep.subr.mxu0 0.0
        %808 = vmatpush1.msra.mxu0 0.0
        %809 = vmatprep.subr.mxu0 0.0
        %810 = vmatpush1.msra.mxu0 0.0
        %811 = vmatprep.subr.mxu0 0.0
        %812 = vmatpush1.msra.mxu0 0.0
        %813 = vmatprep.subr.mxu0 0.0
        %814 = vmatpush1.msra.mxu0 0.0
        %815 = vmatprep.subr.mxu0 0.0
        %816 = vmatpush1.msra.mxu0 0.0
        %817 = vmatprep.subr.mxu0 0.0
        %818 = vmatpush1.msra.mxu0 0.0
        %819 = vmatprep.subr.mxu0 0.0
        %820 = vmatpush1.msra.mxu0 0.0
        %821 = vmatprep.subr.mxu0 0.0
        %822 = vmatpush1.msra.mxu0 0.0
        %823 = vmatprep.subr.mxu0 0.0
        %824 = vmatpush1.msra.mxu0 0.0
        %825 = vmatprep.subr.mxu0 0.0
        %826 = vmatpush1.msra.mxu0 0.0
        %827 = vmatprep.subr.mxu0 0.0
        %828 = vmatpush1.msra.mxu0 0.0
        %829 = vmatprep.subr.mxu0 0.0
        %830 = vmatpush1.msra.mxu0 0.0
        %831 = vmatprep.subr.mxu0 0.0
        %832 = vmatpush1.msra.mxu0 0.0
        %833 = vmatprep.subr.mxu0 0.0
        %834 = vmatpush1.msra.mxu0 0.0
        %835 = vmatprep.subr.mxu0 0.0
        %836 = vmatpush1.msra.mxu0 0.0
        %837 = vmatprep.subr.mxu0 0.0
        %838 = vmatpush1.msra.mxu0 0.0
        %839 = vmatprep.subr.mxu0 0.0
        %840 = vmatpush1.msra.mxu0 0.0
        %841 = vmatprep.subr.mxu0 0.0
        %842 = vmatpush1.msra.mxu0 0.0
        %843 = vmatprep.subr.mxu0 0.0
        %844 = vmatpush1.msra.mxu0 0.0
        %845 = vmatprep.subr.mxu0 0.0
        %846 = vmatpush1.msra.mxu0 0.0
        %847 = vmatprep.subr.mxu0 0.0
        %848 = vmatpush1.msra.mxu0 0.0
        %849 = vmatprep.subr.mxu0 0.0
        %850 = vmatpush1.msra.mxu0 0.0
        %851 = vmatprep.subr.mxu0 0.0
        %852 = vmatpush1.msra.mxu0 0.0
        %853 = vmatprep.subr.mxu0 0.0
        %854 = vmatpush1.msra.mxu0 0.0
        %855 = vmatprep.subr.mxu0 0.0
        %856 = vmatpush1.msra.mxu0 0.0
        %857 = vmatprep.subr.mxu0 0.0
        %858 = vmatpush1.msra.mxu0 0.0
        %859 = vmatprep.subr.mxu0 0.0
        %860 = vmatpush1.msra.mxu0 0.0
        %861 = vmatprep.mubr.f32.mxu0 0.0
        %862 = vmatmul.mubr.f32.gmra.mrb[0].mxu0 %v267
        %v863 = vpop.f32.mrb[0].mxu0
        %v864 = vadd.f32 0.0, %v863
        %v865 = vpop.f32.mrb[0].mxu0
        %v866 = vadd.f32 0.0, %v865
        %867 = vmatprep.mubr.f32.mxu0 0.0
        %868 = vmatmul.mubr.f32.gmra.mrb[0].mxu0 %v270
        %v869 = vpop.f32.mrb[0].mxu0
        %v870 = vadd.f32 0.0, %v869
        %v871 = vpop.f32.mrb[0].mxu0
        %v872 = vadd.f32 0.0, %v871
        %873 = vmatprep.mubr.f32.mxu0 0.0
        %874 = vmatmul.mubr.f32.gmra.mrb[0].mxu0 %v273
        %v875 = vpop.f32.mrb[0].mxu0
        %v876 = vadd.f32 0.0, %v875
        %v877 = vpop.f32.mrb[0].mxu0
        %v878 = vadd.f32 0.0, %v877
        %879 = vmatprep.mubr.f32.mxu0 0.0
        %880 = vmatmul.mubr.f32.gmra.mrb[0].mxu0 %v276
        %v881 = vpop.f32.mrb[0].mxu0
        %v882 = vadd.f32 0.0, %v881
        %v883 = vpop.f32.mrb[0].mxu0
        %v884 = vadd.f32 0.0, %v883
        %885 = vmatprep.mubr.f32.mxu0 0.0
        %886 = vmatmul.mubr.f32.gmra.mrb[0].mxu0 %v279
        %v887 = vpop.f32.mrb[0].mxu0
        %v888 = vadd.f32 0.0, %v887
        %v889 = vpop.f32.mrb[0].mxu0
        %v890 = vadd.f32 0.0, %v889
        %891 = vmatprep.mubr.f32.mxu0 0.0
        %892 = vmatmul.mubr.f32.gmra.mrb[0].mxu0 %v282
        %v893 = vpop.f32.mrb[0].mxu0
        %v894 = vadd.f32 0.0, %v893
        %v895 = vpop.f32.mrb[0].mxu0
        %v896 = vadd.f32 0.0, %v895
        %897 = vmatprep.mubr.f32.mxu0 0.0
        %898 = vmatmul.mubr.f32.gmra.mrb[0].mxu0 %v285
        %v899 = vpop.f32.mrb[0].mxu0
        %v900 = vadd.f32 0.0, %v899
        %v901 = vpop.f32.mrb[0].mxu0
        %v902 = vadd.f32 0.0, %v901
        %903 = vmatprep.mubr.f32.mxu0 0.0
        %904 = vmatmul.mubr.f32.gmra.mrb[0].mxu0 %v288
        %v905 = vpop.f32.mrb[0].mxu0
        %v906 = vadd.f32 0.0, %v905
        %v907 = vpop.f32.mrb[0].mxu0
        %v908 = vadd.f32 0.0, %v907
        %909 = vmatprep.mubr.f32.mxu0 0.0
        %910 = vmatmul.mubr.f32.gmra.mrb[0].mxu0 %v291
        %v911 = vpop.f32.mrb[0].mxu0
        %v912 = vadd.f32 0.0, %v911
        %v913 = vpop.f32.mrb[0].mxu0
        %v914 = vadd.f32 0.0, %v913
        %915 = vmatprep.mubr.f32.mxu0 0.0
        %916 = vmatmul.mubr.f32.gmra.mrb[0].mxu0 %v294
        %v917 = vpop.f32.mrb[0].mxu0
        %v918 = vadd.f32 0.0, %v917
        %v919 = vpop.f32.mrb[0].mxu0
        %v920 = vadd.f32 0.0, %v919
        %921 = vmatprep.mubr.f32.mxu0 0.0
        %922 = vmatmul.mubr.f32.gmra.mrb[0].mxu0 %v297
        %v923 = vpop.f32.mrb[0].mxu0
        %v924 = vadd.f32 0.0, %v923
        %v925 = vpop.f32.mrb[0].mxu0
        %v926 = vadd.f32 0.0, %v925
        %927 = vmatprep.mubr.f32.mxu0 0.0
        %928 = vmatmul.mubr.f32.gmra.mrb[0].mxu0 %v300
        %v929 = vpop.f32.mrb[0].mxu0
        %v930 = vadd.f32 0.0, %v929
        %v931 = vpop.f32.mrb[0].mxu0
        %v932 = vadd.f32 0.0, %v931
        %933 = vmatprep.mubr.f32.mxu0 0.0
        %934 = vmatmul.mubr.f32.gmra.mrb[0].mxu0 %v303
        %v935 = vpop.f32.mrb[0].mxu0
        %v936 = vadd.f32 0.0, %v935
        %v937 = vpop.f32.mrb[0].mxu0
        %v938 = vadd.f32 0.0, %v937
        %939 = vmatprep.mubr.f32.mxu0 0.0
        %940 = vmatmul.mubr.f32.gmra.mrb[0].mxu0 %v306
        %v941 = vpop.f32.mrb[0].mxu0
        %v942 = vadd.f32 0.0, %v941
        %v943 = vpop.f32.mrb[0].mxu0
        %v944 = vadd.f32 0.0, %v943
        %945 = vmatprep.mubr.f32.mxu0 0.0
        %946 = vmatmul.mubr.f32.gmra.mrb[0].mxu0 %v309
        %v947 = vpop.f32.mrb[0].mxu0
        %v948 = vadd.f32 0.0, %v947
        %v949 = vpop.f32.mrb[0].mxu0
        %v950 = vadd.f32 0.0, %v949
        %951 = vmatprep.mubr.f32.mxu0 0.0
        %952 = vmatmul.mubr.f32.gmra.mrb[0].mxu0 %v312
        %v953 = vpop.f32.mrb[0].mxu0
        %v954 = vadd.f32 0.0, %v953
        %v955 = vpop.f32.mrb[0].mxu0
        %v956 = vadd.f32 0.0, %v955
        %957 = vdwg.mxu0
        %v958 = vmul.f32 %v381, 0.5
        %v959 = vmul.f32 %v383, 0.5
        %v960 = vmul.f32 %v542, 0.5
        %v961 = vmul.f32 %v544, 0.5
        %v962 = vmul.f32 %v703, 0.5
        %v963 = vmul.f32 %v705, 0.5
        %v964 = vmul.f32 %v864, 0.5
        %v965 = vmul.f32 %v866, 0.5
        %v966 = vmul.f32 %v387, 0.5
        %v967 = vmul.f32 %v389, 0.5
        %v968 = vmul.f32 %v548, 0.5
        %v969 = vmul.f32 %v550, 0.5
        %v970 = vmul.f32 %v709, 0.5
        %v971 = vmul.f32 %v711, 0.5
        %v972 = vmul.f32 %v870, 0.5
        %v973 = vmul.f32 %v872, 0.5
        %v974 = vmul.f32 %v393, 0.5
        %v975 = vmul.f32 %v395, 0.5
        %v976 = vmul.f32 %v554, 0.5
        %v977 = vmul.f32 %v556, 0.5
        %v978 = vmul.f32 %v715, 0.5
        %v979 = vmul.f32 %v717, 0.5
        %v980 = vmul.f32 %v876, 0.5
        %v981 = vmul.f32 %v878, 0.5
        %v982 = vmul.f32 %v399, 0.5
        %v983 = vmul.f32 %v401, 0.5
        %v984 = vmul.f32 %v560, 0.5
        %v985 = vmul.f32 %v562, 0.5
        %v986 = vmul.f32 %v721, 0.5
        %v987 = vmul.f32 %v723, 0.5
        %v988 = vmul.f32 %v882, 0.5
        %v989 = vmul.f32 %v884, 0.5
        %v990 = vmul.f32 %v405, 0.5
        %v991 = vmul.f32 %v407, 0.5
        %v992 = vmul.f32 %v566, 0.5
        %v993 = vmul.f32 %v568, 0.5
        %v994 = vmul.f32 %v727, 0.5
        %v995 = vmul.f32 %v729, 0.5
        %v996 = vmul.f32 %v888, 0.5
        %v997 = vmul.f32 %v890, 0.5
        %v998 = vmul.f32 %v411, 0.5
        %v999 = vmul.f32 %v413, 0.5
        %v1000 = vmul.f32 %v572, 0.5
        %v1001 = vmul.f32 %v574, 0.5
        %v1002 = vmul.f32 %v733, 0.5
        %v1003 = vmul.f32 %v735, 0.5
        %v1004 = vmul.f32 %v894, 0.5
        %v1005 = vmul.f32 %v896, 0.5
        %v1006 = vmul.f32 %v417, 0.5
        %v1007 = vmul.f32 %v419, 0.5
        %v1008 = vmul.f32 %v578, 0.5
        %v1009 = vmul.f32 %v580, 0.5
        %v1010 = vmul.f32 %v739, 0.5
        %v1011 = vmul.f32 %v741, 0.5
        %v1012 = vmul.f32 %v900, 0.5
        %v1013 = vmul.f32 %v902, 0.5
        %v1014 = vmul.f32 %v423, 0.5
        %v1015 = vmul.f32 %v425, 0.5
        %v1016 = vmul.f32 %v584, 0.5
        %v1017 = vmul.f32 %v586, 0.5
        %v1018 = vmul.f32 %v745, 0.5
        %v1019 = vmul.f32 %v747, 0.5
        %v1020 = vmul.f32 %v906, 0.5
        %v1021 = vmul.f32 %v908, 0.5
        %v1022 = vmul.f32 %v429, 0.5
        %v1023 = vmul.f32 %v431, 0.5
        %v1024 = vmul.f32 %v590, 0.5
        %v1025 = vmul.f32 %v592, 0.5
        %v1026 = vmul.f32 %v751, 0.5
        %v1027 = vmul.f32 %v753, 0.5
        %v1028 = vmul.f32 %v912, 0.5
        %v1029 = vmul.f32 %v914, 0.5
        %v1030 = vmul.f32 %v435, 0.5
        %v1031 = vmul.f32 %v437, 0.5
        %v1032 = vmul.f32 %v596, 0.5
        %v1033 = vmul.f32 %v598, 0.5
        %v1034 = vmul.f32 %v757, 0.5
        %v1035 = vmul.f32 %v759, 0.5
        %v1036 = vmul.f32 %v918, 0.5
        %v1037 = vmul.f32 %v920, 0.5
        %v1038 = vmul.f32 %v441, 0.5
        %v1039 = vmul.f32 %v443, 0.5
        %v1040 = vmul.f32 %v602, 0.5
        %v1041 = vmul.f32 %v604, 0.5
        %v1042 = vmul.f32 %v763, 0.5
        %v1043 = vmul.f32 %v765, 0.5
        %v1044 = vmul.f32 %v924, 0.5
        %v1045 = vmul.f32 %v926, 0.5
        %v1046 = vmul.f32 %v447, 0.5
        %v1047 = vmul.f32 %v449, 0.5
        %v1048 = vmul.f32 %v608, 0.5
        %v1049 = vmul.f32 %v610, 0.5
        %v1050 = vmul.f32 %v769, 0.5
        %v1051 = vmul.f32 %v771, 0.5
        %v1052 = vmul.f32 %v930, 0.5
        %v1053 = vmul.f32 %v932, 0.5
        %v1054 = vmul.f32 %v453, 0.5
        %v1055 = vmul.f32 %v455, 0.5
        %v1056 = vmul.f32 %v614, 0.5
        %v1057 = vmul.f32 %v616, 0.5
        %v1058 = vmul.f32 %v775, 0.5
        %v1059 = vmul.f32 %v777, 0.5
        %v1060 = vmul.f32 %v936, 0.5
        %v1061 = vmul.f32 %v938, 0.5
        %v1062 = vmul.f32 %v459, 0.5
        %v1063 = vmul.f32 %v461, 0.5
        %v1064 = vmul.f32 %v620, 0.5
        %v1065 = vmul.f32 %v622, 0.5
        %v1066 = vmul.f32 %v781, 0.5
        %v1067 = vmul.f32 %v783, 0.5
        %v1068 = vmul.f32 %v942, 0.5
        %v1069 = vmul.f32 %v944, 0.5
        %v1070 = vmul.f32 %v465, 0.5
        %v1071 = vmul.f32 %v467, 0.5
        %v1072 = vmul.f32 %v626, 0.5
        %v1073 = vmul.f32 %v628, 0.5
        %v1074 = vmul.f32 %v787, 0.5
        %v1075 = vmul.f32 %v789, 0.5
        %v1076 = vmul.f32 %v948, 0.5
        %v1077 = vmul.f32 %v950, 0.5
        %v1078 = vmul.f32 %v471, 0.5
        %v1079 = vmul.f32 %v473, 0.5
        %v1080 = vmul.f32 %v632, 0.5
        %v1081 = vmul.f32 %v634, 0.5
        %v1082 = vmul.f32 %v793, 0.5
        %v1083 = vmul.f32 %v795, 0.5
        %v1084 = vmul.f32 %v954, 0.5
        %v1085 = vmul.f32 %v956, 0.5
        %v1086 = vtanh.pop %v958
        %v1087 = vtanh.pop %v959
        %v1088 = vtanh.pop %v960
        %v1089 = vtanh.pop %v961
        %v1090 = vtanh.pop %v962
        %v1091 = vtanh.pop %v963
        %v1092 = vtanh.pop %v964
        %v1093 = vtanh.pop %v965
        %v1094 = vtanh.pop %v966
        %v1095 = vtanh.pop %v967
        %v1096 = vtanh.pop %v968
        %v1097 = vtanh.pop %v969
        %v1098 = vtanh.pop %v970
        %v1099 = vtanh.pop %v971
        %v1100 = vtanh.pop %v972
        %v1101 = vtanh.pop %v973
        %v1102 = vtanh.pop %v974
        %v1103 = vtanh.pop %v975
        %v1104 = vtanh.pop %v976
        %v1105 = vtanh.pop %v977
        %v1106 = vtanh.pop %v978
        %v1107 = vtanh.pop %v979
        %v1108 = vtanh.pop %v980
        %v1109 = vtanh.pop %v981
        %v1110 = vtanh.pop %v982
        %v1111 = vtanh.pop %v983
        %v1112 = vtanh.pop %v984
        %v1113 = vtanh.pop %v985
        %v1114 = vtanh.pop %v986
        %v1115 = vtanh.pop %v987
        %v1116 = vtanh.pop %v988
        %v1117 = vtanh.pop %v989
        %v1118 = vtanh.pop %v990
        %v1119 = vtanh.pop %v991
        %v1120 = vtanh.pop %v992
        %v1121 = vtanh.pop %v993
        %v1122 = vtanh.pop %v994
        %v1123 = vtanh.pop %v995
        %v1124 = vtanh.pop %v996
        %v1125 = vtanh.pop %v997
        %v1126 = vtanh.pop %v998
        %v1127 = vtanh.pop %v999
        %v1128 = vtanh.pop %v1000
        %v1129 = vtanh.pop %v1001
        %v1130 = vtanh.pop %v1002
        %v1131 = vtanh.pop %v1003
        %v1132 = vtanh.pop %v1004
        %v1133 = vtanh.pop %v1005
        %v1134 = vtanh.pop %v1006
        %v1135 = vtanh.pop %v1007
        %v1136 = vtanh.pop %v1008
        %v1137 = vtanh.pop %v1009
        %v1138 = vtanh.pop %v1010
        %v1139 = vtanh.pop %v1011
        %v1140 = vtanh.pop %v1012
        %v1141 = vtanh.pop %v1013
        %v1142 = vtanh.pop %v1014
        %v1143 = vtanh.pop %v1015
        %v1144 = vtanh.pop %v1016
        %v1145 = vtanh.pop %v1017
        %v1146 = vtanh.pop %v1018
        %v1147 = vtanh.pop %v1019
        %v1148 = vtanh.pop %v1020
        %v1149 = vtanh.pop %v1021
        %v1150 = vtanh.pop %v1022
        %v1151 = vtanh.pop %v1023
        %v1152 = vtanh.pop %v1024
        %v1153 = vtanh.pop %v1025
        %v1154 = vtanh.pop %v1026
        %v1155 = vtanh.pop %v1027
        %v1156 = vtanh.pop %v1028
        %v1157 = vtanh.pop %v1029
        %v1158 = vtanh.pop %v1030
        %v1159 = vtanh.pop %v1031
        %v1160 = vtanh.pop %v1032
        %v1161 = vtanh.pop %v1033
        %v1162 = vtanh.pop %v1034
        %v1163 = vtanh.pop %v1035
        %v1164 = vtanh.pop %v1036
        %v1165 = vtanh.pop %v1037
        %v1166 = vtanh.pop %v1038
        %v1167 = vtanh.pop %v1039
        %v1168 = vtanh.pop %v1040
        %v1169 = vtanh.pop %v1041
        %v1170 = vtanh.pop %v1042
        %v1171 = vtanh.pop %v1043
        %v1172 = vtanh.pop %v1044
        %v1173 = vtanh.pop %v1045
        %v1174 = vtanh.pop %v1046
        %v1175 = vtanh.pop %v1047
        %v1176 = vtanh.pop %v1048
        %v1177 = vtanh.pop %v1049
        %v1178 = vtanh.pop %v1050
        %v1179 = vtanh.pop %v1051
        %v1180 = vtanh.pop %v1052
        %v1181 = vtanh.pop %v1053
        %v1182 = vtanh.pop %v1054
        %v1183 = vtanh.pop %v1055
        %v1184 = vtanh.pop %v1056
        %v1185 = vtanh.pop %v1057
        %v1186 = vtanh.pop %v1058
        %v1187 = vtanh.pop %v1059
        %v1188 = vtanh.pop %v1060
        %v1189 = vtanh.pop %v1061
        %v1190 = vtanh.pop %v1062
        %v1191 = vtanh.pop %v1063
        %v1192 = vtanh.pop %v1064
        %v1193 = vtanh.pop %v1065
        %v1194 = vtanh.pop %v1066
        %v1195 = vtanh.pop %v1067
        %v1196 = vtanh.pop %v1068
        %v1197 = vtanh.pop %v1069
        %v1198 = vtanh.pop %v1070
        %v1199 = vtanh.pop %v1071
        %v1200 = vtanh.pop %v1072
        %v1201 = vtanh.pop %v1073
        %v1202 = vtanh.pop %v1074
        %v1203 = vtanh.pop %v1075
        %v1204 = vtanh.pop %v1076
        %v1205 = vtanh.pop %v1077
        %v1206 = vtanh.pop %v1078
        %v1207 = vtanh.pop %v1079
        %v1208 = vtanh.pop %v1080
        %v1209 = vtanh.pop %v1081
        %v1210 = vtanh.pop %v1082
        %v1211 = vtanh.pop %v1083
        %v1212 = vtanh.pop %v1084
        %v1213 = vtanh.pop %v1085
        %v1214 = vadd.f32 %v1086, 1.0
        %v1215 = vadd.f32 %v1087, 1.0
        %v1216 = vadd.f32 %v1088, 1.0
        %v1217 = vadd.f32 %v1089, 1.0
        %v1218 = vadd.f32 %v1090, 1.0
        %v1219 = vadd.f32 %v1091, 1.0
        %v1220 = vadd.f32 %v1092, 1.0
        %v1221 = vadd.f32 %v1093, 1.0
        %v1222 = vadd.f32 %v1094, 1.0
        %v1223 = vadd.f32 %v1095, 1.0
        %v1224 = vadd.f32 %v1096, 1.0
        %v1225 = vadd.f32 %v1097, 1.0
        %v1226 = vadd.f32 %v1098, 1.0
        %v1227 = vadd.f32 %v1099, 1.0
        %v1228 = vadd.f32 %v1100, 1.0
        %v1229 = vadd.f32 %v1101, 1.0
        %v1230 = vadd.f32 %v1102, 1.0
        %v1231 = vadd.f32 %v1103, 1.0
        %v1232 = vadd.f32 %v1104, 1.0
        %v1233 = vadd.f32 %v1105, 1.0
        %v1234 = vadd.f32 %v1106, 1.0
        %v1235 = vadd.f32 %v1107, 1.0
        %v1236 = vadd.f32 %v1108, 1.0
        %v1237 = vadd.f32 %v1109, 1.0
        %v1238 = vadd.f32 %v1110, 1.0
        %v1239 = vadd.f32 %v1111, 1.0
        %v1240 = vadd.f32 %v1112, 1.0
        %v1241 = vadd.f32 %v1113, 1.0
        %v1242 = vadd.f32 %v1114, 1.0
        %v1243 = vadd.f32 %v1115, 1.0
        %v1244 = vadd.f32 %v1116, 1.0
        %v1245 = vadd.f32 %v1117, 1.0
        %v1246 = vadd.f32 %v1118, 1.0
        %v1247 = vadd.f32 %v1119, 1.0
        %v1248 = vadd.f32 %v1120, 1.0
        %v1249 = vadd.f32 %v1121, 1.0
        %v1250 = vadd.f32 %v1122, 1.0
        %v1251 = vadd.f32 %v1123, 1.0
        %v1252 = vadd.f32 %v1124, 1.0
        %v1253 = vadd.f32 %v1125, 1.0
        %v1254 = vadd.f32 %v1126, 1.0
        %v1255 = vadd.f32 %v1127, 1.0
        %v1256 = vadd.f32 %v1128, 1.0
        %v1257 = vadd.f32 %v1129, 1.0
        %v1258 = vadd.f32 %v1130, 1.0
        %v1259 = vadd.f32 %v1131, 1.0
        %v1260 = vadd.f32 %v1132, 1.0
        %v1261 = vadd.f32 %v1133, 1.0
        %v1262 = vadd.f32 %v1134, 1.0
        %v1263 = vadd.f32 %v1135, 1.0
        %v1264 = vadd.f32 %v1136, 1.0
        %v1265 = vadd.f32 %v1137, 1.0
        %v1266 = vadd.f32 %v1138, 1.0
        %v1267 = vadd.f32 %v1139, 1.0
        %v1268 = vadd.f32 %v1140, 1.0
        %v1269 = vadd.f32 %v1141, 1.0
        %v1270 = vadd.f32 %v1142, 1.0
        %v1271 = vadd.f32 %v1143, 1.0
        %v1272 = vadd.f32 %v1144, 1.0
        %v1273 = vadd.f32 %v1145, 1.0
        %v1274 = vadd.f32 %v1146, 1.0
        %v1275 = vadd.f32 %v1147, 1.0
        %v1276 = vadd.f32 %v1148, 1.0
        %v1277 = vadd.f32 %v1149, 1.0
        %v1278 = vadd.f32 %v1150, 1.0
        %v1279 = vadd.f32 %v1151, 1.0
        %v1280 = vadd.f32 %v1152, 1.0
        %v1281 = vadd.f32 %v1153, 1.0
        %v1282 = vadd.f32 %v1154, 1.0
        %v1283 = vadd.f32 %v1155, 1.0
        %v1284 = vadd.f32 %v1156, 1.0
        %v1285 = vadd.f32 %v1157, 1.0
        %v1286 = vadd.f32 %v1158, 1.0
        %v1287 = vadd.f32 %v1159, 1.0
        %v1288 = vadd.f32 %v1160, 1.0
        %v1289 = vadd.f32 %v1161, 1.0
        %v1290 = vadd.f32 %v1162, 1.0
        %v1291 = vadd.f32 %v1163, 1.0
        %v1292 = vadd.f32 %v1164, 1.0
        %v1293 = vadd.f32 %v1165, 1.0
        %v1294 = vadd.f32 %v1166, 1.0
        %v1295 = vadd.f32 %v1167, 1.0
        %v1296 = vadd.f32 %v1168, 1.0
        %v1297 = vadd.f32 %v1169, 1.0
        %v1298 = vadd.f32 %v1170, 1.0
        %v1299 = vadd.f32 %v1171, 1.0
        %v1300 = vadd.f32 %v1172, 1.0
        %v1301 = vadd.f32 %v1173, 1.0
        %v1302 = vadd.f32 %v1174, 1.0
        %v1303 = vadd.f32 %v1175, 1.0
        %v1304 = vadd.f32 %v1176, 1.0
        %v1305 = vadd.f32 %v1177, 1.0
        %v1306 = vadd.f32 %v1178, 1.0
        %v1307 = vadd.f32 %v1179, 1.0
        %v1308 = vadd.f32 %v1180, 1.0
        %v1309 = vadd.f32 %v1181, 1.0
        %v1310 = vadd.f32 %v1182, 1.0
        %v1311 = vadd.f32 %v1183, 1.0
        %v1312 = vadd.f32 %v1184, 1.0
        %v1313 = vadd.f32 %v1185, 1.0
        %v1314 = vadd.f32 %v1186, 1.0
        %v1315 = vadd.f32 %v1187, 1.0
        %v1316 = vadd.f32 %v1188, 1.0
        %v1317 = vadd.f32 %v1189, 1.0
        %v1318 = vadd.f32 %v1190, 1.0
        %v1319 = vadd.f32 %v1191, 1.0
        %v1320 = vadd.f32 %v1192, 1.0
        %v1321 = vadd.f32 %v1193, 1.0
        %v1322 = vadd.f32 %v1194, 1.0
        %v1323 = vadd.f32 %v1195, 1.0
        %v1324 = vadd.f32 %v1196, 1.0
        %v1325 = vadd.f32 %v1197, 1.0
        %v1326 = vadd.f32 %v1198, 1.0
        %v1327 = vadd.f32 %v1199, 1.0
        %v1328 = vadd.f32 %v1200, 1.0
        %v1329 = vadd.f32 %v1201, 1.0
        %v1330 = vadd.f32 %v1202, 1.0
        %v1331 = vadd.f32 %v1203, 1.0
        %v1332 = vadd.f32 %v1204, 1.0
        %v1333 = vadd.f32 %v1205, 1.0
        %v1334 = vadd.f32 %v1206, 1.0
        %v1335 = vadd.f32 %v1207, 1.0
        %v1336 = vadd.f32 %v1208, 1.0
        %v1337 = vadd.f32 %v1209, 1.0
        %v1338 = vadd.f32 %v1210, 1.0
        %v1339 = vadd.f32 %v1211, 1.0
        %v1340 = vadd.f32 %v1212, 1.0
        %v1341 = vadd.f32 %v1213, 1.0
        %v1342 = vmul.f32 %v958, %v1214
        %v1343 = vmul.f32 %v959, %v1215
        %v1344 = vmul.f32 %v960, %v1216
        %v1345 = vmul.f32 %v961, %v1217
        %v1346 = vmul.f32 %v962, %v1218
        %v1347 = vmul.f32 %v963, %v1219
        %v1348 = vmul.f32 %v964, %v1220
        %v1349 = vmul.f32 %v965, %v1221
        %v1350 = vmul.f32 %v966, %v1222
        %v1351 = vmul.f32 %v967, %v1223
        %v1352 = vmul.f32 %v968, %v1224
        %v1353 = vmul.f32 %v969, %v1225
        %v1354 = vmul.f32 %v970, %v1226
        %v1355 = vmul.f32 %v971, %v1227
        %v1356 = vmul.f32 %v972, %v1228
        %v1357 = vmul.f32 %v973, %v1229
        %v1358 = vmul.f32 %v974, %v1230
        %v1359 = vmul.f32 %v975, %v1231
        %v1360 = vmul.f32 %v976, %v1232
        %v1361 = vmul.f32 %v977, %v1233
        %v1362 = vmul.f32 %v978, %v1234
        %v1363 = vmul.f32 %v979, %v1235
        %v1364 = vmul.f32 %v980, %v1236
        %v1365 = vmul.f32 %v981, %v1237
        %v1366 = vmul.f32 %v982, %v1238
        %v1367 = vmul.f32 %v983, %v1239
        %v1368 = vmul.f32 %v984, %v1240
        %v1369 = vmul.f32 %v985, %v1241
        %v1370 = vmul.f32 %v986, %v1242
        %v1371 = vmul.f32 %v987, %v1243
        %v1372 = vmul.f32 %v988, %v1244
        %v1373 = vmul.f32 %v989, %v1245
        %v1374 = vmul.f32 %v990, %v1246
        %v1375 = vmul.f32 %v991, %v1247
        %v1376 = vmul.f32 %v992, %v1248
        %v1377 = vmul.f32 %v993, %v1249
        %v1378 = vmul.f32 %v994, %v1250
        %v1379 = vmul.f32 %v995, %v1251
        %v1380 = vmul.f32 %v996, %v1252
        %v1381 = vmul.f32 %v997, %v1253
        %v1382 = vmul.f32 %v998, %v1254
        %v1383 = vmul.f32 %v999, %v1255
        %v1384 = vmul.f32 %v1000, %v1256
        %v1385 = vmul.f32 %v1001, %v1257
        %v1386 = vmul.f32 %v1002, %v1258
        %v1387 = vmul.f32 %v1003, %v1259
        %v1388 = vmul.f32 %v1004, %v1260
        %v1389 = vmul.f32 %v1005, %v1261
        %v1390 = vmul.f32 %v1006, %v1262
        %v1391 = vmul.f32 %v1007, %v1263
        %v1392 = vmul.f32 %v1008, %v1264
        %v1393 = vmul.f32 %v1009, %v1265
        %v1394 = vmul.f32 %v1010, %v1266
        %v1395 = vmul.f32 %v1011, %v1267
        %v1396 = vmul.f32 %v1012, %v1268
        %v1397 = vmul.f32 %v1013, %v1269
        %v1398 = vmul.f32 %v1014, %v1270
        %v1399 = vmul.f32 %v1015, %v1271
        %v1400 = vmul.f32 %v1016, %v1272
        %v1401 = vmul.f32 %v1017, %v1273
        %v1402 = vmul.f32 %v1018, %v1274
        %v1403 = vmul.f32 %v1019, %v1275
        %v1404 = vmul.f32 %v1020, %v1276
        %v1405 = vmul.f32 %v1021, %v1277
        %v1406 = vmul.f32 %v1022, %v1278
        %v1407 = vmul.f32 %v1023, %v1279
        %v1408 = vmul.f32 %v1024, %v1280
        %v1409 = vmul.f32 %v1025, %v1281
        %v1410 = vmul.f32 %v1026, %v1282
        %v1411 = vmul.f32 %v1027, %v1283
        %v1412 = vmul.f32 %v1028, %v1284
        %v1413 = vmul.f32 %v1029, %v1285
        %v1414 = vmul.f32 %v1030, %v1286
        %v1415 = vmul.f32 %v1031, %v1287
        %v1416 = vmul.f32 %v1032, %v1288
        %v1417 = vmul.f32 %v1033, %v1289
        %v1418 = vmul.f32 %v1034, %v1290
        %v1419 = vmul.f32 %v1035, %v1291
        %v1420 = vmul.f32 %v1036, %v1292
        %v1421 = vmul.f32 %v1037, %v1293
        %v1422 = vmul.f32 %v1038, %v1294
        %v1423 = vmul.f32 %v1039, %v1295
        %v1424 = vmul.f32 %v1040, %v1296
        %v1425 = vmul.f32 %v1041, %v1297
        %v1426 = vmul.f32 %v1042, %v1298
        %v1427 = vmul.f32 %v1043, %v1299
        %v1428 = vmul.f32 %v1044, %v1300
        %v1429 = vmul.f32 %v1045, %v1301
        %v1430 = vmul.f32 %v1046, %v1302
        %v1431 = vmul.f32 %v1047, %v1303
        %v1432 = vmul.f32 %v1048, %v1304
        %v1433 = vmul.f32 %v1049, %v1305
        %v1434 = vmul.f32 %v1050, %v1306
        %v1435 = vmul.f32 %v1051, %v1307
        %v1436 = vmul.f32 %v1052, %v1308
        %v1437 = vmul.f32 %v1053, %v1309
        %v1438 = vmul.f32 %v1054, %v1310
        %v1439 = vmul.f32 %v1055, %v1311
        %v1440 = vmul.f32 %v1056, %v1312
        %v1441 = vmul.f32 %v1057, %v1313
        %v1442 = vmul.f32 %v1058, %v1314
        %v1443 = vmul.f32 %v1059, %v1315
        %v1444 = vmul.f32 %v1060, %v1316
        %v1445 = vmul.f32 %v1061, %v1317
        %v1446 = vmul.f32 %v1062, %v1318
        %v1447 = vmul.f32 %v1063, %v1319
        %v1448 = vmul.f32 %v1064, %v1320
        %v1449 = vmul.f32 %v1065, %v1321
        %v1450 = vmul.f32 %v1066, %v1322
        %v1451 = vmul.f32 %v1067, %v1323
        %v1452 = vmul.f32 %v1068, %v1324
        %v1453 = vmul.f32 %v1069, %v1325
        %v1454 = vmul.f32 %v1070, %v1326
        %v1455 = vmul.f32 %v1071, %v1327
        %v1456 = vmul.f32 %v1072, %v1328
        %v1457 = vmul.f32 %v1073, %v1329
        %v1458 = vmul.f32 %v1074, %v1330
        %v1459 = vmul.f32 %v1075, %v1331
        %v1460 = vmul.f32 %v1076, %v1332
        %v1461 = vmul.f32 %v1077, %v1333
        %v1462 = vmul.f32 %v1078, %v1334
        %v1463 = vmul.f32 %v1079, %v1335
        %v1464 = vmul.f32 %v1080, %v1336
        %v1465 = vmul.f32 %v1081, %v1337
        %v1466 = vmul.f32 %v1082, %v1338
        %v1467 = vmul.f32 %v1083, %v1339
        %v1468 = vmul.f32 %v1084, %v1340
        %v1469 = vmul.f32 %v1085, %v1341
        %1470 = vmatprep.subr.mxu0 %v1343
        %1471 = vmatpush1.msra.mxu0 %v1342
        %1472 = vmatprep.subr.mxu0 %v1351
        %1473 = vmatpush1.msra.mxu0 %v1350
        %1474 = vmatprep.subr.mxu0 %v1359
        %1475 = vmatpush1.msra.mxu0 %v1358
        %1476 = vmatprep.subr.mxu0 %v1367
        %1477 = vmatpush1.msra.mxu0 %v1366
        %1478 = vmatprep.subr.mxu0 %v1375
        %1479 = vmatpush1.msra.mxu0 %v1374
        %1480 = vmatprep.subr.mxu0 %v1383
        %1481 = vmatpush1.msra.mxu0 %v1382
        %1482 = vmatprep.subr.mxu0 %v1391
        %1483 = vmatpush1.msra.mxu0 %v1390
        %1484 = vmatprep.subr.mxu0 %v1399
        %1485 = vmatpush1.msra.mxu0 %v1398
        %1486 = vmatprep.subr.mxu0 %v1407
        %1487 = vmatpush1.msra.mxu0 %v1406
        %1488 = vmatprep.subr.mxu0 %v1415
        %1489 = vmatpush1.msra.mxu0 %v1414
        %1490 = vmatprep.subr.mxu0 %v1423
        %1491 = vmatpush1.msra.mxu0 %v1422
        %1492 = vmatprep.subr.mxu0 %v1431
        %1493 = vmatpush1.msra.mxu0 %v1430
        %1494 = vmatprep.subr.mxu0 %v1439
        %1495 = vmatpush1.msra.mxu0 %v1438
        %1496 = vmatprep.subr.mxu0 %v1447
        %1497 = vmatpush1.msra.mxu0 %v1446
        %1498 = vmatprep.subr.mxu0 %v1455
        %1499 = vmatpush1.msra.mxu0 %v1454
        %1500 = vmatprep.subr.mxu0 %v1463
        %1501 = vmatpush1.msra.mxu0 %v1462
        %1502 = vmatprep.subr.mxu0 0.0
        %1503 = vmatpush1.msra.mxu0 0.0
        %1504 = vmatprep.subr.mxu0 0.0
        %1505 = vmatpush1.msra.mxu0 0.0
        %1506 = vmatprep.subr.mxu0 0.0
        %1507 = vmatpush1.msra.mxu0 0.0
        %1508 = vmatprep.subr.mxu0 0.0
        %1509 = vmatpush1.msra.mxu0 0.0
        %1510 = vmatprep.subr.mxu0 0.0
        %1511 = vmatpush1.msra.mxu0 0.0
        %1512 = vmatprep.subr.mxu0 0.0
        %1513 = vmatpush1.msra.mxu0 0.0
        %1514 = vmatprep.subr.mxu0 0.0
        %1515 = vmatpush1.msra.mxu0 0.0
        %1516 = vmatprep.subr.mxu0 0.0
        %1517 = vmatpush1.msra.mxu0 0.0
        %1518 = vmatprep.subr.mxu0 0.0
        %1519 = vmatpush1.msra.mxu0 0.0
        %1520 = vmatprep.subr.mxu0 0.0
        %1521 = vmatpush1.msra.mxu0 0.0
        %1522 = vmatprep.subr.mxu0 0.0
        %1523 = vmatpush1.msra.mxu0 0.0
        %1524 = vmatprep.subr.mxu0 0.0
        %1525 = vmatpush1.msra.mxu0 0.0
        %1526 = vmatprep.subr.mxu0 0.0
        %1527 = vmatpush1.msra.mxu0 0.0
        %1528 = vmatprep.subr.mxu0 0.0
        %1529 = vmatpush1.msra.mxu0 0.0
        %1530 = vmatprep.subr.mxu0 0.0
        %1531 = vmatpush1.msra.mxu0 0.0
        %1532 = vmatprep.subr.mxu0 0.0
        %1533 = vmatpush1.msra.mxu0 0.0
        %1534 = vmatprep.mubr.f32.mxu0 0.0
        %1535 = vmatmul.mubr.f32.gmra.mrb[0].mxu0 %v247
        %v1536 = vpop.f32.mrb[0].mxu0
        %v1537 = vadd.f32 0.0, %v1536
        %v1538 = vpop.f32.mrb[0].mxu0
        %v1539 = vadd.f32 0.0, %v1538
        %1540 = vmatprep.mubr.f32.mxu0 0.0
        %1541 = vmatmul.mubr.f32.gmra.mrb[0].mxu0 %v248
        %v1542 = vpop.f32.mrb[0].mxu0
        %v1543 = vadd.f32 0.0, %v1542
        %v1544 = vpop.f32.mrb[0].mxu0
        %v1545 = vadd.f32 0.0, %v1544
        %1546 = vdwg.mxu0
        %1547 = vmatprep.subr.mxu0 %v1345
        %1548 = vmatpush1.msra.mxu0 %v1344
        %1549 = vmatprep.subr.mxu0 %v1353
        %1550 = vmatpush1.msra.mxu0 %v1352
        %1551 = vmatprep.subr.mxu0 %v1361
        %1552 = vmatpush1.msra.mxu0 %v1360
        %1553 = vmatprep.subr.mxu0 %v1369
        %1554 = vmatpush1.msra.mxu0 %v1368
        %1555 = vmatprep.subr.mxu0 %v1377
        %1556 = vmatpush1.msra.mxu0 %v1376
        %1557 = vmatprep.subr.mxu0 %v1385
        %1558 = vmatpush1.msra.mxu0 %v1384
        %1559 = vmatprep.subr.mxu0 %v1393
        %1560 = vmatpush1.msra.mxu0 %v1392
        %1561 = vmatprep.subr.mxu0 %v1401
        %1562 = vmatpush1.msra.mxu0 %v1400
        %1563 = vmatprep.subr.mxu0 %v1409
        %1564 = vmatpush1.msra.mxu0 %v1408
        %1565 = vmatprep.subr.mxu0 %v1417
        %1566 = vmatpush1.msra.mxu0 %v1416
        %1567 = vmatprep.subr.mxu0 %v1425
        %1568 = vmatpush1.msra.mxu0 %v1424
        %1569 = vmatprep.subr.mxu0 %v1433
        %1570 = vmatpush1.msra.mxu0 %v1432
        %1571 = vmatprep.subr.mxu0 %v1441
        %1572 = vmatpush1.msra.mxu0 %v1440
        %1573 = vmatprep.subr.mxu0 %v1449
        %1574 = vmatpush1.msra.mxu0 %v1448
        %1575 = vmatprep.subr.mxu0 %v1457
        %1576 = vmatpush1.msra.mxu0 %v1456
        %1577 = vmatprep.subr.mxu0 %v1465
        %1578 = vmatpush1.msra.mxu0 %v1464
        %1579 = vmatprep.subr.mxu0 0.0
        %1580 = vmatpush1.msra.mxu0 0.0
        %1581 = vmatprep.subr.mxu0 0.0
        %1582 = vmatpush1.msra.mxu0 0.0
        %1583 = vmatprep.subr.mxu0 0.0
        %1584 = vmatpush1.msra.mxu0 0.0
        %1585 = vmatprep.subr.mxu0 0.0
        %1586 = vmatpush1.msra.mxu0 0.0
        %1587 = vmatprep.subr.mxu0 0.0
        %1588 = vmatpush1.msra.mxu0 0.0
        %1589 = vmatprep.subr.mxu0 0.0
        %1590 = vmatpush1.msra.mxu0 0.0
        %1591 = vmatprep.subr.mxu0 0.0
        %1592 = vmatpush1.msra.mxu0 0.0
        %1593 = vmatprep.subr.mxu0 0.0
        %1594 = vmatpush1.msra.mxu0 0.0
        %1595 = vmatprep.subr.mxu0 0.0
        %1596 = vmatpush1.msra.mxu0 0.0
        %1597 = vmatprep.subr.mxu0 0.0
        %1598 = vmatpush1.msra.mxu0 0.0
        %1599 = vmatprep.subr.mxu0 0.0
        %1600 = vmatpush1.msra.mxu0 0.0
        %1601 = vmatprep.subr.mxu0 0.0
        %1602 = vmatpush1.msra.mxu0 0.0
        %1603 = vmatprep.subr.mxu0 0.0
        %1604 = vmatpush1.msra.mxu0 0.0
        %1605 = vmatprep.subr.mxu0 0.0
        %1606 = vmatpush1.msra.mxu0 0.0
        %1607 = vmatprep.subr.mxu0 0.0
        %1608 = vmatpush1.msra.mxu0 0.0
        %1609 = vmatprep.subr.mxu0 0.0
        %1610 = vmatpush1.msra.mxu0 0.0
        %1611 = vmatprep.mubr.f32.mxu0 0.0
        %1612 = vmatmul.mubr.f32.gmra.mrb[0].mxu0 %v247
        %v1613 = vpop.f32.mrb[0].mxu0
        %v1614 = vadd.f32 0.0, %v1613
        %v1615 = vpop.f32.mrb[0].mxu0
        %v1616 = vadd.f32 0.0, %v1615
        %1617 = vmatprep.mubr.f32.mxu0 0.0
        %1618 = vmatmul.mubr.f32.gmra.mrb[0].mxu0 %v248
        %v1619 = vpop.f32.mrb[0].mxu0
        %v1620 = vadd.f32 0.0, %v1619
        %v1621 = vpop.f32.mrb[0].mxu0
        %v1622 = vadd.f32 0.0, %v1621
        %1623 = vdwg.mxu0
        %1624 = vmatprep.subr.mxu0 %v1347
        %1625 = vmatpush1.msra.mxu0 %v1346
        %1626 = vmatprep.subr.mxu0 %v1355
        %1627 = vmatpush1.msra.mxu0 %v1354
        %1628 = vmatprep.subr.mxu0 %v1363
        %1629 = vmatpush1.msra.mxu0 %v1362
        %1630 = vmatprep.subr.mxu0 %v1371
        %1631 = vmatpush1.msra.mxu0 %v1370
        %1632 = vmatprep.subr.mxu0 %v1379
        %1633 = vmatpush1.msra.mxu0 %v1378
        %1634 = vmatprep.subr.mxu0 %v1387
        %1635 = vmatpush1.msra.mxu0 %v1386
        %1636 = vmatprep.subr.mxu0 %v1395
        %1637 = vmatpush1.msra.mxu0 %v1394
        %1638 = vmatprep.subr.mxu0 %v1403
        %1639 = vmatpush1.msra.mxu0 %v1402
        %1640 = vmatprep.subr.mxu0 %v1411
        %1641 = vmatpush1.msra.mxu0 %v1410
        %1642 = vmatprep.subr.mxu0 %v1419
        %1643 = vmatpush1.msra.mxu0 %v1418
        %1644 = vmatprep.subr.mxu0 %v1427
        %1645 = vmatpush1.msra.mxu0 %v1426
        %1646 = vmatprep.subr.mxu0 %v1435
        %1647 = vmatpush1.msra.mxu0 %v1434
        %1648 = vmatprep.subr.mxu0 %v1443
        %1649 = vmatpush1.msra.mxu0 %v1442
        %1650 = vmatprep.subr.mxu0 %v1451
        %1651 = vmatpush1.msra.mxu0 %v1450
        %1652 = vmatprep.subr.mxu0 %v1459
        %1653 = vmatpush1.msra.mxu0 %v1458
        %1654 = vmatprep.subr.mxu0 %v1467
        %1655 = vmatpush1.msra.mxu0 %v1466
        %1656 = vmatprep.subr.mxu0 0.0
        %1657 = vmatpush1.msra.mxu0 0.0
        %1658 = vmatprep.subr.mxu0 0.0
        %1659 = vmatpush1.msra.mxu0 0.0
        %1660 = vmatprep.subr.mxu0 0.0
        %1661 = vmatpush1.msra.mxu0 0.0
        %1662 = vmatprep.subr.mxu0 0.0
        %1663 = vmatpush1.msra.mxu0 0.0
        %1664 = vmatprep.subr.mxu0 0.0
        %1665 = vmatpush1.msra.mxu0 0.0
        %1666 = vmatprep.subr.mxu0 0.0
        %1667 = vmatpush1.msra.mxu0 0.0
        %1668 = vmatprep.subr.mxu0 0.0
        %1669 = vmatpush1.msra.mxu0 0.0
        %1670 = vmatprep.subr.mxu0 0.0
        %1671 = vmatpush1.msra.mxu0 0.0
        %1672 = vmatprep.subr.mxu0 0.0
        %1673 = vmatpush1.msra.mxu0 0.0
        %1674 = vmatprep.subr.mxu0 0.0
        %1675 = vmatpush1.msra.mxu0 0.0
        %1676 = vmatprep.subr.mxu0 0.0
        %1677 = vmatpush1.msra.mxu0 0.0
        %1678 = vmatprep.subr.mxu0 0.0
        %1679 = vmatpush1.msra.mxu0 0.0
        %1680 = vmatprep.subr.mxu0 0.0
        %1681 = vmatpush1.msra.mxu0 0.0
        %1682 = vmatprep.subr.mxu0 0.0
        %1683 = vmatpush1.msra.mxu0 0.0
        %1684 = vmatprep.subr.mxu0 0.0
        %1685 = vmatpush1.msra.mxu0 0.0
        %1686 = vmatprep.subr.mxu0 0.0
        %1687 = vmatpush1.msra.mxu0 0.0
        %1688 = vmatprep.mubr.f32.mxu0 0.0
        %1689 = vmatmul.mubr.f32.gmra.mrb[0].mxu0 %v247
        %v1690 = vpop.f32.mrb[0].mxu0
        %v1691 = vadd.f32 0.0, %v1690
        %v1692 = vpop.f32.mrb[0].mxu0
        %v1693 = vadd.f32 0.0, %v1692
        %1694 = vmatprep.mubr.f32.mxu0 0.0
        %1695 = vmatmul.mubr.f32.gmra.mrb[0].mxu0 %v248
        %v1696 = vpop.f32.mrb[0].mxu0
        %v1697 = vadd.f32 0.0, %v1696
        %v1698 = vpop.f32.mrb[0].mxu0
        %v1699 = vadd.f32 0.0, %v1698
        %1700 = vdwg.mxu0
        %1701 = vmatprep.subr.mxu0 %v1349
        %1702 = vmatpush1.msra.mxu0 %v1348
        %1703 = vmatprep.subr.mxu0 %v1357
        %1704 = vmatpush1.msra.mxu0 %v1356
        %1705 = vmatprep.subr.mxu0 %v1365
        %1706 = vmatpush1.msra.mxu0 %v1364
        %1707 = vmatprep.subr.mxu0 %v1373
        %1708 = vmatpush1.msra.mxu0 %v1372
        %1709 = vmatprep.subr.mxu0 %v1381
        %1710 = vmatpush1.msra.mxu0 %v1380
        %1711 = vmatprep.subr.mxu0 %v1389
        %1712 = vmatpush1.msra.mxu0 %v1388
        %1713 = vmatprep.subr.mxu0 %v1397
        %1714 = vmatpush1.msra.mxu0 %v1396
        %1715 = vmatprep.subr.mxu0 %v1405
        %1716 = vmatpush1.msra.mxu0 %v1404
        %1717 = vmatprep.subr.mxu0 %v1413
        %1718 = vmatpush1.msra.mxu0 %v1412
        %1719 = vmatprep.subr.mxu0 %v1421
        %1720 = vmatpush1.msra.mxu0 %v1420
        %1721 = vmatprep.subr.mxu0 %v1429
        %1722 = vmatpush1.msra.mxu0 %v1428
        %1723 = vmatprep.subr.mxu0 %v1437
        %1724 = vmatpush1.msra.mxu0 %v1436
        %1725 = vmatprep.subr.mxu0 %v1445
        %1726 = vmatpush1.msra.mxu0 %v1444
        %1727 = vmatprep.subr.mxu0 %v1453
        %1728 = vmatpush1.msra.mxu0 %v1452
        %1729 = vmatprep.subr.mxu0 %v1461
        %1730 = vmatpush1.msra.mxu0 %v1460
        %1731 = vmatprep.subr.mxu0 %v1469
        %1732 = vmatpush1.msra.mxu0 %v1468
        %1733 = vmatprep.subr.mxu0 0.0
        %1734 = vmatpush1.msra.mxu0 0.0
        %1735 = vmatprep.subr.mxu0 0.0
        %1736 = vmatpush1.msra.mxu0 0.0
        %1737 = vmatprep.subr.mxu0 0.0
        %1738 = vmatpush1.msra.mxu0 0.0
        %1739 = vmatprep.subr.mxu0 0.0
        %1740 = vmatpush1.msra.mxu0 0.0
        %1741 = vmatprep.subr.mxu0 0.0
        %1742 = vmatpush1.msra.mxu0 0.0
        %1743 = vmatprep.subr.mxu0 0.0
        %1744 = vmatpush1.msra.mxu0 0.0
        %1745 = vmatprep.subr.mxu0 0.0
        %1746 = vmatpush1.msra.mxu0 0.0
        %1747 = vmatprep.subr.mxu0 0.0
        %1748 = vmatpush1.msra.mxu0 0.0
        %1749 = vmatprep.subr.mxu0 0.0
        %1750 = vmatpush1.msra.mxu0 0.0
        %1751 = vmatprep.subr.mxu0 0.0
        %1752 = vmatpush1.msra.mxu0 0.0
        %1753 = vmatprep.subr.mxu0 0.0
        %1754 = vmatpush1.msra.mxu0 0.0
        %1755 = vmatprep.subr.mxu0 0.0
        %1756 = vmatpush1.msra.mxu0 0.0
        %1757 = vmatprep.subr.mxu0 0.0
        %1758 = vmatpush1.msra.mxu0 0.0
        %1759 = vmatprep.subr.mxu0 0.0
        %1760 = vmatpush1.msra.mxu0 0.0
        %1761 = vmatprep.subr.mxu0 0.0
        %1762 = vmatpush1.msra.mxu0 0.0
        %1763 = vmatprep.subr.mxu0 0.0
        %1764 = vmatpush1.msra.mxu0 0.0
        %1765 = vmatprep.mubr.f32.mxu0 0.0
        %1766 = vmatmul.mubr.f32.gmra.mrb[0].mxu0 %v247
        %v1767 = vpop.f32.mrb[0].mxu0
        %v1768 = vadd.f32 0.0, %v1767
        %v1769 = vpop.f32.mrb[0].mxu0
        %v1770 = vadd.f32 0.0, %v1769
        %1771 = vmatprep.mubr.f32.mxu0 0.0
        %1772 = vmatmul.mubr.f32.gmra.mrb[0].mxu0 %v248
        %v1773 = vpop.f32.mrb[0].mxu0
        %v1774 = vadd.f32 0.0, %v1773
        %v1775 = vpop.f32.mrb[0].mxu0
        %v1776 = vadd.f32 0.0, %v1775
        %1777 = vdwg.mxu0
        %1778 = vst [vmem:[%s189] sm:$0xff] %v1537
        %1779 = vst [vmem:[%s189 + $0x8] sm:$0xff] %v1543
        %s1780 = scalar_lea.vmem %s189, 16 [#allocation6]
        %1781 = vst [vmem:[%s1780] sm:$0xff] %v1539
        %1782 = vst [vmem:[%s1780 + $0x8] sm:$0xff] %v1545
        %s1783 = scalar_lea.vmem %s189, 32 [#allocation6]
        %1784 = vst [vmem:[%s1783] sm:$0xff] %v1614
        %1785 = vst [vmem:[%s1783 + $0x8] sm:$0xff] %v1620
        %s1786 = scalar_lea.vmem %s189, 48 [#allocation6]
        %1787 = vst [vmem:[%s1786] sm:$0xff] %v1616
        %1788 = vst [vmem:[%s1786 + $0x8] sm:$0xff] %v1622
        %s1789 = scalar_lea.vmem %s189, 64 [#allocation6]
        %1790 = vst [vmem:[%s1789] sm:$0xff] %v1691
        %1791 = vst [vmem:[%s1789 + $0x8] sm:$0xff] %v1697
        %s1792 = scalar_lea.vmem %s189, 80 [#allocation6]
        %1793 = vst [vmem:[%s1792] sm:$0xff] %v1693
        %1794 = vst [vmem:[%s1792 + $0x8] sm:$0xff] %v1699
        %s1795 = scalar_lea.vmem %s189, 96 [#allocation6]
        %1796 = vst [vmem:[%s1795] sm:$0xff] %v1768
        %1797 = vst [vmem:[%s1795 + $0x8] sm:$0xff] %v1774
        %s1798 = scalar_lea.vmem %s189, 112 [#allocation6]
        %1799 = vst [vmem:[%s1798] sm:$0xff] %v1770
        %1800 = vst [vmem:[%s1798 + $0x8] sm:$0xff] %v1776
        %s1801 = sand.u32 %s96, 1
        %s1802 = scalar_lea.sflag [#allocation5], %s1801
        %s1803 = sand.u32 %s96, 1
        %s1804 = smul.addr %s1803, 128
        %s1805 = scalar_lea.vmem [#allocation6], %s1804
        // Predicated region
        $region37: #{s2_activation.1} parent=31 // pred_check
          %p1806 = pneg %p106
        $region38: #{s2_activation.1} parent=31 // pred_check_branch
          %1808 = sbr.rel (%p1806) target = $region40
        $region39: #{s2_activation.1} parent=31 // pred_region
          %s1809 = smul.u32 8, %s20
          %s1811 = ssub.s32 2048, 2048
          %1812 = vsyncadd %s1802, %s1811
          %s1813 = smul.addr %s1809, 2
          %s1814 = smul.addr %s1813, 128
          %s1815 = scalar_lea.hbm %s3, %s1814
          %s1816 = sshll.u32 %s1805, 4
          %s1817 = int_to_ptr.vmem [resolvable:$true] %s1816
          %1822 = dma.vmem_to_hbm [thread:$0]  %s1817, 2048, %s1815, %s1802, 128, 128, 8
        $region40: #{s2_activation.1} parent=31 // pred_fallthru
          _
      $region32: #{s2_activation.1} parent=5 // pred_fallthru
        _
      %p1823 = scmp.le.s32.totalorder 2, %s15
      // Predicated region
      $region41: #{s2_activation.1} parent=5 // pred_check
        %p1824 = pneg %p1823
      $region42: #{s2_activation.1} parent=5 // pred_check_branch
        %1826 = sbr.rel (%p1824) target = $region44
      $region43: #{s2_activation.1} parent=5 // pred_region
        %s1827 = ssub.s32 %s15, 2
        // Predicated region
        $region45: #{s2_activation.1} parent=43 // pred_check
          %p1828 = pneg %p112
        $region46: #{s2_activation.1} parent=43 // pred_check_branch
          %1830 = sbr.rel (%p1828) target = $region48
        $region47: #{s2_activation.1} parent=43 // pred_region
          %s1831 = sand.u32 %s97, 1
          %s1832 = scalar_lea.sflag [#allocation5], %s1831
          %s1833 = sand.u32 %s97, 1
          %s1834 = smul.addr %s1833, 128
          %s1835 = scalar_lea.vmem [#allocation6], %s1834
          %1836 = dma.done %s1832, 2048
        $region48: #{s2_activation.1} parent=43 // pred_fallthru
          _
      $region44: #{s2_activation.1} parent=5 // pred_fallthru
        _
    $region6: #{s2_activation.1} parent=1 // loop_footer
      %s19 = sadd.s32 1, %s15
    $region7: #{s2_activation.1} parent=1 // loop_footer_branch
      %14 = sbr.rel target = $region3
    $region8: #{s2_activation.1} parent=1 // loop_exit
      _
    %1837 = vsyncpa [#allocation4], 1
    %s1838 = scalar_lea.sflag [#allocation4], 1
    %1839 = vsyncpa %s1838, 1
    %1840 = vsyncpa [#allocation5], 1
    %s1841 = scalar_lea.sflag [#allocation5], 1
    %1842 = vsyncpa %s1841, 1

</llo_original>
